<compile_context>
chip_gen: v7x
topology: tpu7x:2x2x1
jax: 0.10.0
libtpu: 0.0.40
codegen_flags: <defaults>
</compile_context>

<pallas_src>
import jax
import jax.numpy as jnp
from jax.experimental import pallas as pl
from jax.experimental.pallas import tpu as pltpu


def _round_up(n, m):
    return ((n + m - 1) // m) * m


def autoencoder_kernel(
    x_ref,
    w1_ref, b1_ref, w2_ref, b2_ref, w3_ref, b3_ref, w4_ref, b4_ref,   # encoder
    w5_ref, b5_ref, w6_ref, b6_ref, w7_ref, b7_ref, w8_ref, b8_ref,   # decoder
    code_ref, out_ref,
):
    # MXU operand dtype (bf16 by default); accumulation is always f32.
    cdt = w1_ref.dtype

    def dense(h, w_ref, b_ref, relu=True):
        y = jnp.dot(h, w_ref[...], preferred_element_type=jnp.float32)
        y = y + b_ref[...]                      # bias add / ReLU in f32 (VPU)
        return jnp.maximum(y, 0.0) if relu else y

    # x stays in its HBM dtype (single read); cast on-chip for the MXU.
    x = x_ref[...].astype(cdt)

    # ---- encoder ----
    h = dense(x, w1_ref, b1_ref).astype(cdt)
    h = dense(h, w2_ref, b2_ref).astype(cdt)
    h = dense(h, w3_ref, b3_ref).astype(cdt)
    code = dense(h, w4_ref, b4_ref)             # f32, lane-padded width
    code_ref[...] = code.astype(code_ref.dtype)

    # ---- decoder ----
    d = dense(code.astype(cdt), w5_ref, b5_ref).astype(cdt)
    d = dense(d, w6_ref, b6_ref).astype(cdt)
    d = dense(d, w7_ref, b7_ref).astype(cdt)
    recon = dense(d, w8_ref, b8_ref, relu=False)   # no final activation
    out_ref[...] = recon.astype(out_ref.dtype)


def deep_autoencoder_forward(
    x,
    params,
    *,
    batch_tile=None,
    compute_dtype=jnp.bfloat16,
    out_dtype=None,
    vmem_limit_bytes=None,
):
    """params = [W1, b1, ..., W8, b8] with W as [in, out], b as [1, out].

    compute_dtype: dtype of the MXU operands (default bf16; accumulation and
    elementwise math stay f32).  out_dtype: dtype of the returned arrays
    (default x.dtype; pass bf16 to halve the recon writeback traffic if the
    consumer tolerates it).
    """
    B, input_dim = x.shape
    code_dim = params[6].shape[1]           # W4: [hidden3, code_dim]
    out_dtype = x.dtype if out_dtype is None else jnp.dtype(out_dtype)

    # Weights -> compute dtype (tiny, DMA'd once); biases -> f32 for the add.
    kp = [p.astype(compute_dtype) if i % 2 == 0 else p.astype(jnp.float32)
          for i, p in enumerate(params)]

    # Lane-dense code output: pad the code width to a multiple of 128 lanes by
    # zero-padding W4/b4 columns and W5 rows.  Padded code lanes are exactly 0
    # (0*w + 0 bias, ReLU) and the zero rows of W5 make the decoder identical.
    code_pad = _round_up(code_dim, 128)
    if code_pad != code_dim:
        pad = code_pad - code_dim
        kp[6] = jnp.pad(kp[6], ((0, 0), (0, pad)))   # W4: [h3, code_pad]
        kp[7] = jnp.pad(kp[7], ((0, 0), (0, pad)))   # b4: [1, code_pad]
        kp[8] = jnp.pad(kp[8], ((0, pad), (0, 0)))   # W5: [code_pad, h3]

    # Sublane multiple for the batch-tiled arrays (x and the two outputs).
    min_item = min(jnp.dtype(x.dtype).itemsize, jnp.dtype(out_dtype).itemsize)
    sub = {4: 8, 2: 16, 1: 32}[min_item]

    # Large batch tile fills the MXU M dim and amortizes per-grid-step
    # overhead; keep grid >= 2 when possible so both v7x TensorCores get work.
    if batch_tile is None:
        batch_tile = min(1024, _round_up(max(pl.cdiv(B, 2), sub), sub))
    batch_tile = max(sub, _round_up(batch_tile, sub))
    batch_tile = min(batch_tile, _round_up(B, sub))
    grid_b = pl.cdiv(B, batch_tile)

    # No wrapper-side pad/slice over the batch: Pallas masks the boundary
    # block's stores, and rows are independent so this is exact.
    x_spec = pl.BlockSpec((batch_tile, input_dim), lambda i: (i, 0))
    param_specs = [pl.BlockSpec(p.shape, lambda i: (0, 0)) for p in kp]
    code_spec = pl.BlockSpec((batch_tile, code_pad), lambda i: (i, 0))
    out_spec = pl.BlockSpec((batch_tile, input_dim), lambda i: (i, 0))

    cp_kwargs = dict(dimension_semantics=("parallel",))
    if vmem_limit_bytes is not None:
        cp_kwargs["vmem_limit_bytes"] = vmem_limit_bytes

    code, recon = pl.pallas_call(
        autoencoder_kernel,
        out_shape=(
            jax.ShapeDtypeStruct((B, code_pad), out_dtype),
            jax.ShapeDtypeStruct((B, input_dim), out_dtype),
        ),
        grid_spec=pltpu.PrefetchScalarGridSpec(
            num_scalar_prefetch=0,
            grid=(grid_b,),
            in_specs=[x_spec] + param_specs,
            out_specs=[code_spec, out_spec],
        ),
        compiler_params=pltpu.CompilerParams(**cp_kwargs),
    )(x, *kp)

    if code_pad != code_dim:
        code = code[:, :code_dim]
    return code, recon


def init_params(key, input_dim, h1, h2, h3, code_dim, dtype=jnp.float32):
    """nn.Linear-style uniform(-1/sqrt(fan_in), 1/sqrt(fan_in)) init.
    Weights returned as [in, out]; biases as [1, out]."""
    dims = [input_dim, h1, h2, h3, code_dim, h3, h2, h1, input_dim]
    params = []
    for li in range(8):
        fan_in, fan_out = dims[li], dims[li + 1]
        key, kw, kb = jax.random.split(key, 3)
        bound = 1.0 / (fan_in ** 0.5)
        w = jax.random.uniform(kw, (fan_in, fan_out), dtype, -bound, bound)
        b = jax.random.uniform(kb, (1, fan_out), dtype, -bound, bound)
        params += [w, b]
    return params


def reference_forward(x, params, compute_dtype=jnp.bfloat16):
    """Pure-JAX reference mirroring the kernel's dtype path
    (compute-dtype operands, f32 accumulation / bias / ReLU)."""
    cdt = compute_dtype

    def dense(h, w, b, relu=True):
        y = jnp.dot(h.astype(cdt), w.astype(cdt),
                    preferred_element_type=jnp.float32) + b.astype(jnp.float32)
        return jnp.maximum(y, 0.0) if relu else y

    h = x
    for li in range(4):                      # encoder (code_activation=True)
        h = dense(h, params[2 * li], params[2 * li + 1])
    code = h
    for li in range(4, 7):                   # decoder hidden layers
        h = dense(h, params[2 * li], params[2 * li + 1])
    recon = dense(h, params[14], params[15], relu=False)
    return code.astype(x.dtype), recon.astype(x.dtype)


if __name__ == "__main__":
    # Small shapes consistent with the module's __init__ signature.
    input_dim, h1, h2, h3, code_dim = 256, 128, 64, 32, 16
    batch = 256

    key = jax.random.PRNGKey(0)
    key, kx = jax.random.split(key)
    x = jax.random.normal(kx, (batch, input_dim), jnp.float32)
    params = init_params(key, input_dim, h1, h2, h3, code_dim)

    # Default bf16-compute path (auto tile -> 128 rows, grid = 2).
    code, recon = deep_autoencoder_forward(x, params)
    jax.block_until_ready((code, recon))
    code_ref, recon_ref = reference_forward(x, params, compute_dtype=jnp.bfloat16)
    assert code.shape == (batch, code_dim)
    assert recon.shape == (batch, input_dim)
    assert jnp.allclose(code, code_ref, atol=1e-2, rtol=1e-2)
    assert jnp.allclose(recon, recon_ref, atol=1e-2, rtol=1e-2)

    # Ragged batch (exercises Pallas boundary-block masking; no pad/slice).
    xb = x[:200]
    code_b, recon_b = deep_autoencoder_forward(xb, params, batch_tile=128)
    jax.block_until_ready((code_b, recon_b))
    code_bref, recon_bref = reference_forward(xb, params, compute_dtype=jnp.bfloat16)
    assert code_b.shape == (200, code_dim)
    assert recon_b.shape == (200, input_dim)
    assert jnp.allclose(code_b, code_bref, atol=1e-2, rtol=1e-2)
    assert jnp.allclose(recon_b, recon_bref, atol=1e-2, rtol=1e-2)

    # f32-compute path for an exactness check of the fused structure.
    code_f, recon_f = deep_autoencoder_forward(x, params, compute_dtype=jnp.float32)
    jax.block_until_ready((code_f, recon_f))
    code_fref, recon_fref = reference_forward(x, params, compute_dtype=jnp.float32)
    assert jnp.allclose(code_f, code_fref, atol=1e-5, rtol=1e-5)
    assert jnp.allclose(recon_f, recon_fref, atol=1e-5, rtol=1e-5)

    print("KERNEL_OK")
</pallas_src>

<mosaic_0001>
module attributes {stable_mosaic.version = 11 : i64} {
  func.func @autoencoder_kernel(%arg0: i32, %arg1: memref<128x256xf32, #tpu.memory_space<vmem>>, %arg2: memref<256x128xbf16, #tpu.memory_space<vmem>>, %arg3: memref<1x128xf32, #tpu.memory_space<vmem>>, %arg4: memref<128x64xbf16, #tpu.memory_space<vmem>>, %arg5: memref<1x64xf32, #tpu.memory_space<vmem>>, %arg6: memref<64x32xbf16, #tpu.memory_space<vmem>>, %arg7: memref<1x32xf32, #tpu.memory_space<vmem>>, %arg8: memref<32x128xbf16, #tpu.memory_space<vmem>>, %arg9: memref<1x128xf32, #tpu.memory_space<vmem>>, %arg10: memref<128x32xbf16, #tpu.memory_space<vmem>>, %arg11: memref<1x32xf32, #tpu.memory_space<vmem>>, %arg12: memref<32x64xbf16, #tpu.memory_space<vmem>>, %arg13: memref<1x64xf32, #tpu.memory_space<vmem>>, %arg14: memref<64x128xbf16, #tpu.memory_space<vmem>>, %arg15: memref<1x128xf32, #tpu.memory_space<vmem>>, %arg16: memref<128x256xbf16, #tpu.memory_space<vmem>>, %arg17: memref<1x256xf32, #tpu.memory_space<vmem>>, %arg18: memref<128x128xf32, #tpu.memory_space<vmem>>, %arg19: memref<128x256xf32, #tpu.memory_space<vmem>>) attributes {dimension_semantics = [#tpu.dimension_semantics<parallel>], iteration_bounds = array<i64: 2>, scalar_prefetch = 0 : i64, scratch_operands = 0 : i64, tpu.core_type = #tpu.core_type<tc>, window_params = [{transform_indices = @transform_0, window_bounds = array<i64: 128, 256>}, {pipeline_mode = #tpu.pipeline_mode<synchronous>, transform_indices = @transform_1, window_bounds = array<i64: 256, 128>}, {pipeline_mode = #tpu.pipeline_mode<synchronous>, transform_indices = @transform_2, window_bounds = array<i64: 1, 128>}, {pipeline_mode = #tpu.pipeline_mode<synchronous>, transform_indices = @transform_3, window_bounds = array<i64: 128, 64>}, {pipeline_mode = #tpu.pipeline_mode<synchronous>, transform_indices = @transform_4, window_bounds = array<i64: 1, 64>}, {pipeline_mode = #tpu.pipeline_mode<synchronous>, transform_indices = @transform_5, window_bounds = array<i64: 64, 32>}, {pipeline_mode = #tpu.pipeline_mode<synchronous>, transform_indices = @transform_6, window_bounds = array<i64: 1, 32>}, {pipeline_mode = #tpu.pipeline_mode<synchronous>, transform_indices = @transform_7, window_bounds = array<i64: 32, 128>}, {pipeline_mode = #tpu.pipeline_mode<synchronous>, transform_indices = @transform_8, window_bounds = array<i64: 1, 128>}, {pipeline_mode = #tpu.pipeline_mode<synchronous>, transform_indices = @transform_9, window_bounds = array<i64: 128, 32>}, {pipeline_mode = #tpu.pipeline_mode<synchronous>, transform_indices = @transform_10, window_bounds = array<i64: 1, 32>}, {pipeline_mode = #tpu.pipeline_mode<synchronous>, transform_indices = @transform_11, window_bounds = array<i64: 32, 64>}, {pipeline_mode = #tpu.pipeline_mode<synchronous>, transform_indices = @transform_12, window_bounds = array<i64: 1, 64>}, {pipeline_mode = #tpu.pipeline_mode<synchronous>, transform_indices = @transform_13, window_bounds = array<i64: 64, 128>}, {pipeline_mode = #tpu.pipeline_mode<synchronous>, transform_indices = @transform_14, window_bounds = array<i64: 1, 128>}, {pipeline_mode = #tpu.pipeline_mode<synchronous>, transform_indices = @transform_15, window_bounds = array<i64: 128, 256>}, {pipeline_mode = #tpu.pipeline_mode<synchronous>, transform_indices = @transform_16, window_bounds = array<i64: 1, 256>}, {transform_indices = @transform_17, window_bounds = array<i64: 128, 128>}, {transform_indices = @transform_18, window_bounds = array<i64: 128, 256>}]} {
    %c0 = arith.constant 0 : index
    %c0_0 = arith.constant 0 : index
    %0 = vector.load %arg1[%c0, %c0_0] : memref<128x256xf32, #tpu.memory_space<vmem>>, vector<128x256xf32>
    %1 = arith.truncf %0 : vector<128x256xf32> to vector<128x256xbf16>
    %c0_1 = arith.constant 0 : index
    %c0_2 = arith.constant 0 : index
    %2 = vector.load %arg2[%c0_1, %c0_2] : memref<256x128xbf16, #tpu.memory_space<vmem>>, vector<256x128xbf16>
    %cst = arith.constant dense<0.000000e+00> : vector<128x128xf32>
    %3 = tpu.matmul %1, %2, %cst {dimension_numbers = #tpu.dot_dimension_numbers<[1], [0], [0], [1], [0, 0, 1, 1], [], []>} : vector<128x256xbf16>, vector<256x128xbf16>, vector<128x128xf32> -> vector<128x128xf32>
    %c0_3 = arith.constant 0 : index
    %c0_4 = arith.constant 0 : index
    %4 = vector.load %arg3[%c0_3, %c0_4] : memref<1x128xf32, #tpu.memory_space<vmem>>, vector<1x128xf32>
    %5 = vector.broadcast %4 : vector<1x128xf32> to vector<128x128xf32>
    %6 = arith.addf %3, %5 : vector<128x128xf32>
    %cst_5 = arith.constant 0.000000e+00 : f32
    %7 = vector.broadcast %cst_5 : f32 to vector<128x128xf32>
    %8 = arith.maximumf %6, %7 : vector<128x128xf32>
    %9 = arith.truncf %8 : vector<128x128xf32> to vector<128x128xbf16>
    %c0_6 = arith.constant 0 : index
    %c0_7 = arith.constant 0 : index
    %10 = vector.load %arg4[%c0_6, %c0_7] : memref<128x64xbf16, #tpu.memory_space<vmem>>, vector<128x64xbf16>
    %cst_8 = arith.constant dense<0.000000e+00> : vector<128x64xf32>
    %11 = tpu.matmul %9, %10, %cst_8 {dimension_numbers = #tpu.dot_dimension_numbers<[1], [0], [0], [1], [0, 0, 1, 1], [], []>} : vector<128x128xbf16>, vector<128x64xbf16>, vector<128x64xf32> -> vector<128x64xf32>
    %c0_9 = arith.constant 0 : index
    %c0_10 = arith.constant 0 : index
    %12 = vector.load %arg5[%c0_9, %c0_10] : memref<1x64xf32, #tpu.memory_space<vmem>>, vector<1x64xf32>
    %13 = vector.broadcast %12 : vector<1x64xf32> to vector<128x64xf32>
    %14 = arith.addf %11, %13 : vector<128x64xf32>
    %cst_11 = arith.constant 0.000000e+00 : f32
    %15 = vector.broadcast %cst_11 : f32 to vector<128x64xf32>
    %16 = arith.maximumf %14, %15 : vector<128x64xf32>
    %17 = arith.truncf %16 : vector<128x64xf32> to vector<128x64xbf16>
    %c0_12 = arith.constant 0 : index
    %c0_13 = arith.constant 0 : index
    %18 = vector.load %arg6[%c0_12, %c0_13] : memref<64x32xbf16, #tpu.memory_space<vmem>>, vector<64x32xbf16>
    %cst_14 = arith.constant dense<0.000000e+00> : vector<128x32xf32>
    %19 = tpu.matmul %17, %18, %cst_14 {dimension_numbers = #tpu.dot_dimension_numbers<[1], [0], [0], [1], [0, 0, 1, 1], [], []>} : vector<128x64xbf16>, vector<64x32xbf16>, vector<128x32xf32> -> vector<128x32xf32>
    %c0_15 = arith.constant 0 : index
    %c0_16 = arith.constant 0 : index
    %20 = vector.load %arg7[%c0_15, %c0_16] : memref<1x32xf32, #tpu.memory_space<vmem>>, vector<1x32xf32>
    %21 = vector.broadcast %20 : vector<1x32xf32> to vector<128x32xf32>
    %22 = arith.addf %19, %21 : vector<128x32xf32>
    %cst_17 = arith.constant 0.000000e+00 : f32
    %23 = vector.broadcast %cst_17 : f32 to vector<128x32xf32>
    %24 = arith.maximumf %22, %23 : vector<128x32xf32>
    %25 = arith.truncf %24 : vector<128x32xf32> to vector<128x32xbf16>
    %c0_18 = arith.constant 0 : index
    %c0_19 = arith.constant 0 : index
    %26 = vector.load %arg8[%c0_18, %c0_19] : memref<32x128xbf16, #tpu.memory_space<vmem>>, vector<32x128xbf16>
    %cst_20 = arith.constant dense<0.000000e+00> : vector<128x128xf32>
    %27 = tpu.matmul %25, %26, %cst_20 {dimension_numbers = #tpu.dot_dimension_numbers<[1], [0], [0], [1], [0, 0, 1, 1], [], []>} : vector<128x32xbf16>, vector<32x128xbf16>, vector<128x128xf32> -> vector<128x128xf32>
    %c0_21 = arith.constant 0 : index
    %c0_22 = arith.constant 0 : index
    %28 = vector.load %arg9[%c0_21, %c0_22] : memref<1x128xf32, #tpu.memory_space<vmem>>, vector<1x128xf32>
    %29 = vector.broadcast %28 : vector<1x128xf32> to vector<128x128xf32>
    %30 = arith.addf %27, %29 : vector<128x128xf32>
    %cst_23 = arith.constant 0.000000e+00 : f32
    %31 = vector.broadcast %cst_23 : f32 to vector<128x128xf32>
    %32 = arith.maximumf %30, %31 : vector<128x128xf32>
    %c0_24 = arith.constant 0 : index
    %c0_25 = arith.constant 0 : index
    %33 = vector.load %arg18[%c0_24, %c0_25] : memref<128x128xf32, #tpu.memory_space<vmem>>, vector<128x128xf32>
    tpu.vector_store %arg18[%c0_24, %c0_25], %32 {strides = array<i32>} : memref<128x128xf32, #tpu.memory_space<vmem>>, vector<128x128xf32>,
    %34 = arith.truncf %32 : vector<128x128xf32> to vector<128x128xbf16>
    %c0_26 = arith.constant 0 : index
    %c0_27 = arith.constant 0 : index
    %35 = vector.load %arg10[%c0_26, %c0_27] : memref<128x32xbf16, #tpu.memory_space<vmem>>, vector<128x32xbf16>
    %cst_28 = arith.constant dense<0.000000e+00> : vector<128x32xf32>
    %36 = tpu.matmul %34, %35, %cst_28 {dimension_numbers = #tpu.dot_dimension_numbers<[1], [0], [0], [1], [0, 0, 1, 1], [], []>} : vector<128x128xbf16>, vector<128x32xbf16>, vector<128x32xf32> -> vector<128x32xf32>
    %c0_29 = arith.constant 0 : index
    %c0_30 = arith.constant 0 : index
    %37 = vector.load %arg11[%c0_29, %c0_30] : memref<1x32xf32, #tpu.memory_space<vmem>>, vector<1x32xf32>
    %38 = vector.broadcast %37 : vector<1x32xf32> to vector<128x32xf32>
    %39 = arith.addf %36, %38 : vector<128x32xf32>
    %cst_31 = arith.constant 0.000000e+00 : f32
    %40 = vector.broadcast %cst_31 : f32 to vector<128x32xf32>
    %41 = arith.maximumf %39, %40 : vector<128x32xf32>
    %42 = arith.truncf %41 : vector<128x32xf32> to vector<128x32xbf16>
    %c0_32 = arith.constant 0 : index
    %c0_33 = arith.constant 0 : index
    %43 = vector.load %arg12[%c0_32, %c0_33] : memref<32x64xbf16, #tpu.memory_space<vmem>>, vector<32x64xbf16>
    %cst_34 = arith.constant dense<0.000000e+00> : vector<128x64xf32>
    %44 = tpu.matmul %42, %43, %cst_34 {dimension_numbers = #tpu.dot_dimension_numbers<[1], [0], [0], [1], [0, 0, 1, 1], [], []>} : vector<128x32xbf16>, vector<32x64xbf16>, vector<128x64xf32> -> vector<128x64xf32>
    %c0_35 = arith.constant 0 : index
    %c0_36 = arith.constant 0 : index
    %45 = vector.load %arg13[%c0_35, %c0_36] : memref<1x64xf32, #tpu.memory_space<vmem>>, vector<1x64xf32>
    %46 = vector.broadcast %45 : vector<1x64xf32> to vector<128x64xf32>
    %47 = arith.addf %44, %46 : vector<128x64xf32>
    %cst_37 = arith.constant 0.000000e+00 : f32
    %48 = vector.broadcast %cst_37 : f32 to vector<128x64xf32>
    %49 = arith.maximumf %47, %48 : vector<128x64xf32>
    %50 = arith.truncf %49 : vector<128x64xf32> to vector<128x64xbf16>
    %c0_38 = arith.constant 0 : index
    %c0_39 = arith.constant 0 : index
    %51 = vector.load %arg14[%c0_38, %c0_39] : memref<64x128xbf16, #tpu.memory_space<vmem>>, vector<64x128xbf16>
    %cst_40 = arith.constant dense<0.000000e+00> : vector<128x128xf32>
    %52 = tpu.matmul %50, %51, %cst_40 {dimension_numbers = #tpu.dot_dimension_numbers<[1], [0], [0], [1], [0, 0, 1, 1], [], []>} : vector<128x64xbf16>, vector<64x128xbf16>, vector<128x128xf32> -> vector<128x128xf32>
    %c0_41 = arith.constant 0 : index
    %c0_42 = arith.constant 0 : index
    %53 = vector.load %arg15[%c0_41, %c0_42] : memref<1x128xf32, #tpu.memory_space<vmem>>, vector<1x128xf32>
    %54 = vector.broadcast %53 : vector<1x128xf32> to vector<128x128xf32>
    %55 = arith.addf %52, %54 : vector<128x128xf32>
    %cst_43 = arith.constant 0.000000e+00 : f32
    %56 = vector.broadcast %cst_43 : f32 to vector<128x128xf32>
    %57 = arith.maximumf %55, %56 : vector<128x128xf32>
    %58 = arith.truncf %57 : vector<128x128xf32> to vector<128x128xbf16>
    %c0_44 = arith.constant 0 : index
    %c0_45 = arith.constant 0 : index
    %59 = vector.load %arg16[%c0_44, %c0_45] : memref<128x256xbf16, #tpu.memory_space<vmem>>, vector<128x256xbf16>
    %cst_46 = arith.constant dense<0.000000e+00> : vector<128x256xf32>
    %60 = tpu.matmul %58, %59, %cst_46 {dimension_numbers = #tpu.dot_dimension_numbers<[1], [0], [0], [1], [0, 0, 1, 1], [], []>} : vector<128x128xbf16>, vector<128x256xbf16>, vector<128x256xf32> -> vector<128x256xf32>
    %c0_47 = arith.constant 0 : index
    %c0_48 = arith.constant 0 : index
    %61 = vector.load %arg17[%c0_47, %c0_48] : memref<1x256xf32, #tpu.memory_space<vmem>>, vector<1x256xf32>
    %62 = vector.broadcast %61 : vector<1x256xf32> to vector<128x256xf32>
    %63 = arith.addf %60, %62 : vector<128x256xf32>
    %c0_49 = arith.constant 0 : index
    %c0_50 = arith.constant 0 : index
    %64 = vector.load %arg19[%c0_49, %c0_50] : memref<128x256xf32, #tpu.memory_space<vmem>>, vector<128x256xf32>
    tpu.vector_store %arg19[%c0_49, %c0_50], %63 {strides = array<i32>} : memref<128x256xf32, #tpu.memory_space<vmem>>, vector<128x256xf32>,
    return
  }
  func.func @transform_0(%arg0: i32) -> (i32, i32) {
    %c0_i32 = arith.constant 0 : i32
    %c0_i32_0 = arith.constant 0 : i32
    return %arg0, %c0_i32 : i32, i32
  }
  func.func @transform_1(%arg0: i32) -> (i32, i32) {
    %c0_i32 = arith.constant 0 : i32
    %c0_i32_0 = arith.constant 0 : i32
    %c0_i32_1 = arith.constant 0 : i32
    return %c0_i32, %c0_i32_0 : i32, i32
  }
  func.func @transform_2(%arg0: i32) -> (i32, i32) {
    %c0_i32 = arith.constant 0 : i32
    %c0_i32_0 = arith.constant 0 : i32
    %c0_i32_1 = arith.constant 0 : i32
    return %c0_i32, %c0_i32_0 : i32, i32
  }
  func.func @transform_3(%arg0: i32) -> (i32, i32) {
    %c0_i32 = arith.constant 0 : i32
    %c0_i32_0 = arith.constant 0 : i32
    %c0_i32_1 = arith.constant 0 : i32
    return %c0_i32, %c0_i32_0 : i32, i32
  }
  func.func @transform_4(%arg0: i32) -> (i32, i32) {
    %c0_i32 = arith.constant 0 : i32
    %c0_i32_0 = arith.constant 0 : i32
    %c0_i32_1 = arith.constant 0 : i32
    return %c0_i32, %c0_i32_0 : i32, i32
  }
  func.func @transform_5(%arg0: i32) -> (i32, i32) {
    %c0_i32 = arith.constant 0 : i32
    %c0_i32_0 = arith.constant 0 : i32
    %c0_i32_1 = arith.constant 0 : i32
    return %c0_i32, %c0_i32_0 : i32, i32
  }
  func.func @transform_6(%arg0: i32) -> (i32, i32) {
    %c0_i32 = arith.constant 0 : i32
    %c0_i32_0 = arith.constant 0 : i32
    %c0_i32_1 = arith.constant 0 : i32
    return %c0_i32, %c0_i32_0 : i32, i32
  }
  func.func @transform_7(%arg0: i32) -> (i32, i32) {
    %c0_i32 = arith.constant 0 : i32
    %c0_i32_0 = arith.constant 0 : i32
    %c0_i32_1 = arith.constant 0 : i32
    return %c0_i32, %c0_i32_0 : i32, i32
  }
  func.func @transform_8(%arg0: i32) -> (i32, i32) {
    %c0_i32 = arith.constant 0 : i32
    %c0_i32_0 = arith.constant 0 : i32
    %c0_i32_1 = arith.constant 0 : i32
    return %c0_i32, %c0_i32_0 : i32, i32
  }
  func.func @transform_9(%arg0: i32) -> (i32, i32) {
    %c0_i32 = arith.constant 0 : i32
    %c0_i32_0 = arith.constant 0 : i32
    %c0_i32_1 = arith.constant 0 : i32
    return %c0_i32, %c0_i32_0 : i32, i32
  }
  func.func @transform_10(%arg0: i32) -> (i32, i32) {
    %c0_i32 = arith.constant 0 : i32
    %c0_i32_0 = arith.constant 0 : i32
    %c0_i32_1 = arith.constant 0 : i32
    return %c0_i32, %c0_i32_0 : i32, i32
  }
  func.func @transform_11(%arg0: i32) -> (i32, i32) {
    %c0_i32 = arith.constant 0 : i32
    %c0_i32_0 = arith.constant 0 : i32
    %c0_i32_1 = arith.constant 0 : i32
    return %c0_i32, %c0_i32_0 : i32, i32
  }
  func.func @transform_12(%arg0: i32) -> (i32, i32) {
    %c0_i32 = arith.constant 0 : i32
    %c0_i32_0 = arith.constant 0 : i32
    %c0_i32_1 = arith.constant 0 : i32
    return %c0_i32, %c0_i32_0 : i32, i32
  }
  func.func @transform_13(%arg0: i32) -> (i32, i32) {
    %c0_i32 = arith.constant 0 : i32
    %c0_i32_0 = arith.constant 0 : i32
    %c0_i32_1 = arith.constant 0 : i32
    return %c0_i32, %c0_i32_0 : i32, i32
  }
  func.func @transform_14(%arg0: i32) -> (i32, i32) {
    %c0_i32 = arith.constant 0 : i32
    %c0_i32_0 = arith.constant 0 : i32
    %c0_i32_1 = arith.constant 0 : i32
    return %c0_i32, %c0_i32_0 : i32, i32
  }
  func.func @transform_15(%arg0: i32) -> (i32, i32) {
    %c0_i32 = arith.constant 0 : i32
    %c0_i32_0 = arith.constant 0 : i32
    %c0_i32_1 = arith.constant 0 : i32
    return %c0_i32, %c0_i32_0 : i32, i32
  }
  func.func @transform_16(%arg0: i32) -> (i32, i32) {
    %c0_i32 = arith.constant 0 : i32
    %c0_i32_0 = arith.constant 0 : i32
    %c0_i32_1 = arith.constant 0 : i32
    return %c0_i32, %c0_i32_0 : i32, i32
  }
  func.func @transform_17(%arg0: i32) -> (i32, i32) {
    %c0_i32 = arith.constant 0 : i32
    %c0_i32_0 = arith.constant 0 : i32
    return %arg0, %c0_i32 : i32, i32
  }
  func.func @transform_18(%arg0: i32) -> (i32, i32) {
    %c0_i32 = arith.constant 0 : i32
    %c0_i32_0 = arith.constant 0 : i32
    return %arg0, %c0_i32 : i32, i32
  }
}

</mosaic_0001>

<llo_original>
// kernel: tpu_custom_call.1
$region0: #{tpu_custom_call.1}
  #allocation0 [shape = 'u32[]', space=smem, size = 0x4, offset = 0x4, fixed_abs, tag = 'smem constant byte address 0x4 - core index']
  #allocation1 [shape = 'u32[144,128]{1,0:T(1,128)}', space=vmem, size = 0x12000, scoped, tag = 'internal scratch']
  %s0 = inlined_call_operand.hbm [shape: f32[256,256], index: 0, kind: input, shape index: {}]
  %s1 = inlined_call_operand.vmem [shape: bf16[256,128], index: 1, kind: input, shape index: {}]
  %s2 = inlined_call_operand.hbm [shape: f32[1,128], index: 2, kind: input, shape index: {}]
  %s3 = inlined_call_operand.vmem [shape: bf16[128,64], index: 3, kind: input, shape index: {}]
  %s4 = inlined_call_operand.hbm [shape: f32[1,64], index: 4, kind: input, shape index: {}]
  %s5 = inlined_call_operand.vmem [shape: bf16[64,32], index: 5, kind: input, shape index: {}]
  %s6 = inlined_call_operand.hbm [shape: f32[1,32], index: 6, kind: input, shape index: {}]
  %s7 = inlined_call_operand.hbm [shape: bf16[32,128], index: 7, kind: input, shape index: {}]
  %s8 = inlined_call_operand.hbm [shape: f32[1,128], index: 8, kind: input, shape index: {}]
  %s9 = inlined_call_operand.vmem [shape: bf16[128,32], index: 9, kind: input, shape index: {}]
  %s10 = inlined_call_operand.vmem [shape: f32[1,32], index: 10, kind: input, shape index: {}]
  %s11 = inlined_call_operand.hbm [shape: bf16[32,64], index: 11, kind: input, shape index: {}]
  %s12 = inlined_call_operand.vmem [shape: f32[1,64], index: 12, kind: input, shape index: {}]
  %s13 = inlined_call_operand.hbm [shape: bf16[64,128], index: 13, kind: input, shape index: {}]
  %s14 = inlined_call_operand.vmem [shape: f32[1,128], index: 14, kind: input, shape index: {}]
  %s15 = inlined_call_operand.vmem [shape: bf16[128,256], index: 15, kind: input, shape index: {}]
  %s16 = inlined_call_operand.vmem [shape: f32[1,256], index: 16, kind: input, shape index: {}]
  %s17 = inlined_call_operand.hbm [shape: f32[256,128], index: 17, kind: output, shape index: {0}]
  %s18 = inlined_call_operand.hbm [shape: f32[256,256], index: 18, kind: output, shape index: {1}]
  %19 = xla_tuple %s17, %s18
  %s20 = sld [smem:[#allocation0]]
  $region141: #{tpu_custom_call.1} parent=0
    _
  %s22 = ssub.s32 1, %s20
  %s23 = scalar_select 0, %s22, %s20
  $region1: #{tpu_custom_call.1} parent=0
    #allocation2 [shape = 'u8[262144]{0}', space=vmem, size = 0x40000, scoped, tag = 'input window, operand 0']
    #allocation3 [shape = 's32[2]{0}', space=sflag, size = 0x8, scoped, tag = 'scoped memory for tpu_custom_call.1']
    #allocation4 [shape = 's32[2]{0}', space=sflag, size = 0x8, scoped, tag = 'scoped memory for tpu_custom_call.1']
    #allocation5 [shape = 'u8[512]{0}', space=vmem, size = 0x400, scoped, tag = 'input window, operand 2, single buffered']
    #allocation6 [shape = 's32[1]{0}', space=sflag, size = 0x4, scoped, tag = 'scoped memory for tpu_custom_call.1']
    #allocation7 [shape = 'u8[512]{0}', space=vmem, size = 0x400, scoped, tag = 'input window, operand 4, single buffered']
    #allocation8 [shape = 'u8[512]{0}', space=vmem, size = 0x400, scoped, tag = 'input window, operand 6, single buffered']
    #allocation9 [shape = 's32[1]{0}', space=sflag, size = 0x4, scoped, tag = 'scoped memory for tpu_custom_call.1']
    #allocation10 [shape = 'u8[8192]{0}', space=vmem, size = 0x2000, scoped, tag = 'input window, operand 7, single buffered']
    #allocation11 [shape = 'u8[512]{0}', space=vmem, size = 0x400, scoped, tag = 'input window, operand 8, single buffered']
    #allocation12 [shape = 's32[1]{0}', space=sflag, size = 0x4, scoped, tag = 'scoped memory for tpu_custom_call.1']
    #allocation13 [shape = 'u8[8192]{0}', space=vmem, size = 0x2000, scoped, tag = 'input window, operand 11, single buffered']
    #allocation14 [shape = 'u8[16384]{0}', space=vmem, size = 0x4000, scoped, tag = 'input window, operand 13, single buffered']
    #allocation15 [shape = 's32[1]{0}', space=sflag, size = 0x4, scoped, tag = 'scoped memory for tpu_custom_call.1']
    #allocation16 [shape = 'u8[131072]{0}', space=vmem, size = 0x20000, scoped, tag = 'output window, operand 0']
    #allocation17 [shape = 'u8[262144]{0}', space=vmem, size = 0x40000, scoped, tag = 'output window, operand 1']
    #allocation18 [shape = 's32[2]{0}', space=sflag, size = 0x8, scoped, tag = 'scoped memory for tpu_custom_call.1']
    %24 = vsyncpa [#allocation3], 0
    %s25 = scalar_lea.sflag [#allocation3], 1
    %26 = vsyncpa %s25, 0
    %27 = vsyncpa [#allocation6], 0
    %28 = vsyncpa [#allocation9], 0
    %29 = vsyncpa [#allocation12], 0
    %30 = vsyncpa [#allocation15], 0
    %31 = vsyncpa [#allocation4], 0
    %s32 = scalar_lea.sflag [#allocation4], 1
    %33 = vsyncpa %s32, 0
    %34 = vsyncpa [#allocation18], 0
    %s35 = scalar_lea.sflag [#allocation18], 1
    %36 = vsyncpa %s35, 0
    loop: start=0, step=1, limit=4
    $region2: #{tpu_custom_call.1} parent=1 // loop_pre_header
      _
    $region3: #{tpu_custom_call.1} parent=1 // loop_header
      %s38 = sphi 0, %s42
      %p39 = scmp.ge.s32.totalorder %s38, 4
      %s48 = sphi 0, %s50
      %s51 = sphi 0, %s48
      %s52 = sphi 0, %s51
      %s68 = sphi 0, %s52
      %s72 = sphi 0, %s72
      %s74 = sphi 0, %s72
      %s75 = sphi 0, %s74
      %s89 = sphi 0, %s75
      %s93 = sphi 0, %s93
      %s95 = sphi 0, %s93
      %s96 = sphi 0, %s95
      %s110 = sphi 0, %s96
      %s114 = sphi 0, %s114
      %s116 = sphi 0, %s114
      %s117 = sphi 0, %s116
      %s131 = sphi 0, %s117
      %s135 = sphi 0, %s135
      %s137 = sphi 0, %s135
      %s138 = sphi 0, %s137
      %s152 = sphi 0, %s138
      %s156 = sphi 0, %s156
      %s158 = sphi 0, %s156
      %s159 = sphi 0, %s158
      %s173 = sphi 0, %s159
      %s177 = sphi 0, %s177
      %s179 = sphi 0, %s177
      %s180 = sphi 0, %s179
      %s194 = sphi 0, %s180
      %s198 = sphi 0, %s198
      %s200 = sphi 0, %s198
      %s201 = sphi 0, %s200
      %s215 = sphi 0, %s201
      %s219 = sphi 0, %s219
      %s221 = sphi 0, %s219
      %s222 = sphi 0, %s221
      %s236 = sphi 0, %s222
      %s240 = sphi 0, %s240
      %s242 = sphi 0, %s240
      %s243 = sphi 0, %s242
      %s257 = sphi 0, %s243
      %s261 = sphi 0, %s261
      %s263 = sphi 0, %s261
      %s264 = sphi 0, %s263
      %s278 = sphi 0, %s264
      %s282 = sphi 0, %s282
      %s284 = sphi 0, %s282
      %s285 = sphi 0, %s284
      %s299 = sphi 0, %s285
      %s303 = sphi 0, %s303
      %s305 = sphi 0, %s303
      %s306 = sphi 0, %s305
      %s320 = sphi 0, %s306
      %s324 = sphi 0, %s324
      %s326 = sphi 0, %s324
      %s327 = sphi 0, %s326
      %s341 = sphi 0, %s327
      %s345 = sphi 0, %s345
      %s347 = sphi 0, %s345
      %s348 = sphi 0, %s347
      %s362 = sphi 0, %s348
      %s366 = sphi 0, %s366
      %s368 = sphi 0, %s366
      %s369 = sphi 0, %s368
      %s383 = sphi 0, %s369
      %s387 = sphi 0, %s387
      %s389 = sphi 0, %s387
      %s390 = sphi 0, %s389
      %s404 = sphi 0, %s390
      %s410 = sphi 0, %s412
      %s413 = sphi 0, %s410
      %s414 = sphi 0, %s413
      %s430 = sphi 0, %s414
      %s436 = sphi 0, %s438
      %s439 = sphi 0, %s436
      %s440 = sphi 0, %s439
      %s456 = sphi 0, %s440
    $region4: #{tpu_custom_call.1} parent=1 // loop_header_branch
      %41 = sbr.rel (%p39) target = $region8
    $region5: #{tpu_custom_call.1} parent=1 // loop_body
      %s43 = ssub.s32 %s38, 1
      %s44 = ssub.s32 %s38, 2
      %s45 = sadd.s32 %s38, 1
      %s46 = ssub.s32 %s38, %s45
      %p47 = scmp.eq.s32.totalorder %s46, 0
      %s49 = sadd.s32 %s48, 1
      %s50 = scalar_select %p47, %s48, %s49
      %p53 = pneg %p47
      %p54 = scmp.eq.s32.totalorder %s38, 1
      %p55 = por %p53, %p54
      %p56 = scmp.ne.s32.totalorder %s48, %s51
      %p57 = scmp.eq.s32.totalorder %s38, 0
      %p58 = por %p56, %p57
      %p59 = scmp.ne.s32.totalorder %s48, %s51
      %p60 = scmp.eq.s32.totalorder %s43, 1
      %p61 = por %p59, %p60
      %p62 = scmp.ne.s32.totalorder %s51, %s52
      %p63 = scmp.eq.s32.totalorder %s43, 0
      %p64 = por %p62, %p63
      %p65 = scmp.ne.s32.totalorder %s51, %s52
      %p66 = scmp.eq.s32.totalorder %s44, 1
      %p67 = por %p65, %p66
      %p69 = scmp.ne.s32.totalorder %s52, %s68
      %p70 = scmp.eq.s32.totalorder %s44, 0
      %p71 = por %p69, %p70
      %s73 = sadd.s32 %s72, 1
      %p76 = scmp.eq.s32.totalorder %s38, 1
      %p77 = scmp.ne.s32.totalorder %s72, %s74
      %p78 = scmp.eq.s32.totalorder %s38, 0
      %p79 = por %p77, %p78
      %p80 = scmp.ne.s32.totalorder %s72, %s74
      %p81 = scmp.eq.s32.totalorder %s43, 1
      %p82 = por %p80, %p81
      %p83 = scmp.ne.s32.totalorder %s74, %s75
      %p84 = scmp.eq.s32.totalorder %s43, 0
      %p85 = por %p83, %p84
      %p86 = scmp.ne.s32.totalorder %s74, %s75
      %p87 = scmp.eq.s32.totalorder %s44, 1
      %p88 = por %p86, %p87
      %p90 = scmp.ne.s32.totalorder %s75, %s89
      %p91 = scmp.eq.s32.totalorder %s44, 0
      %p92 = por %p90, %p91
      %s94 = sadd.s32 %s93, 1
      %p97 = scmp.eq.s32.totalorder %s38, 1
      %p98 = scmp.ne.s32.totalorder %s93, %s95
      %p99 = scmp.eq.s32.totalorder %s38, 0
      %p100 = por %p98, %p99
      %p101 = scmp.ne.s32.totalorder %s93, %s95
      %p102 = scmp.eq.s32.totalorder %s43, 1
      %p103 = por %p101, %p102
      %p104 = scmp.ne.s32.totalorder %s95, %s96
      %p105 = scmp.eq.s32.totalorder %s43, 0
      %p106 = por %p104, %p105
      %p107 = scmp.ne.s32.totalorder %s95, %s96
      %p108 = scmp.eq.s32.totalorder %s44, 1
      %p109 = por %p107, %p108
      %p111 = scmp.ne.s32.totalorder %s96, %s110
      %p112 = scmp.eq.s32.totalorder %s44, 0
      %p113 = por %p111, %p112
      %s115 = sadd.s32 %s114, 1
      %p118 = scmp.eq.s32.totalorder %s38, 1
      %p119 = scmp.ne.s32.totalorder %s114, %s116
      %p120 = scmp.eq.s32.totalorder %s38, 0
      %p121 = por %p119, %p120
      %p122 = scmp.ne.s32.totalorder %s114, %s116
      %p123 = scmp.eq.s32.totalorder %s43, 1
      %p124 = por %p122, %p123
      %p125 = scmp.ne.s32.totalorder %s116, %s117
      %p126 = scmp.eq.s32.totalorder %s43, 0
      %p127 = por %p125, %p126
      %p128 = scmp.ne.s32.totalorder %s116, %s117
      %p129 = scmp.eq.s32.totalorder %s44, 1
      %p130 = por %p128, %p129
      %p132 = scmp.ne.s32.totalorder %s117, %s131
      %p133 = scmp.eq.s32.totalorder %s44, 0
      %p134 = por %p132, %p133
      %s136 = sadd.s32 %s135, 1
      %p139 = scmp.eq.s32.totalorder %s38, 1
      %p140 = scmp.ne.s32.totalorder %s135, %s137
      %p141 = scmp.eq.s32.totalorder %s38, 0
      %p142 = por %p140, %p141
      %p143 = scmp.ne.s32.totalorder %s135, %s137
      %p144 = scmp.eq.s32.totalorder %s43, 1
      %p145 = por %p143, %p144
      %p146 = scmp.ne.s32.totalorder %s137, %s138
      %p147 = scmp.eq.s32.totalorder %s43, 0
      %p148 = por %p146, %p147
      %p149 = scmp.ne.s32.totalorder %s137, %s138
      %p150 = scmp.eq.s32.totalorder %s44, 1
      %p151 = por %p149, %p150
      %p153 = scmp.ne.s32.totalorder %s138, %s152
      %p154 = scmp.eq.s32.totalorder %s44, 0
      %p155 = por %p153, %p154
      %s157 = sadd.s32 %s156, 1
      %p160 = scmp.eq.s32.totalorder %s38, 1
      %p161 = scmp.ne.s32.totalorder %s156, %s158
      %p162 = scmp.eq.s32.totalorder %s38, 0
      %p163 = por %p161, %p162
      %p164 = scmp.ne.s32.totalorder %s156, %s158
      %p165 = scmp.eq.s32.totalorder %s43, 1
      %p166 = por %p164, %p165
      %p167 = scmp.ne.s32.totalorder %s158, %s159
      %p168 = scmp.eq.s32.totalorder %s43, 0
      %p169 = por %p167, %p168
      %p170 = scmp.ne.s32.totalorder %s158, %s159
      %p171 = scmp.eq.s32.totalorder %s44, 1
      %p172 = por %p170, %p171
      %p174 = scmp.ne.s32.totalorder %s159, %s173
      %p175 = scmp.eq.s32.totalorder %s44, 0
      %p176 = por %p174, %p175
      %s178 = sadd.s32 %s177, 1
      %p181 = scmp.eq.s32.totalorder %s38, 1
      %p182 = scmp.ne.s32.totalorder %s177, %s179
      %p183 = scmp.eq.s32.totalorder %s38, 0
      %p184 = por %p182, %p183
      %p185 = scmp.ne.s32.totalorder %s177, %s179
      %p186 = scmp.eq.s32.totalorder %s43, 1
      %p187 = por %p185, %p186
      %p188 = scmp.ne.s32.totalorder %s179, %s180
      %p189 = scmp.eq.s32.totalorder %s43, 0
      %p190 = por %p188, %p189
      %p191 = scmp.ne.s32.totalorder %s179, %s180
      %p192 = scmp.eq.s32.totalorder %s44, 1
      %p193 = por %p191, %p192
      %p195 = scmp.ne.s32.totalorder %s180, %s194
      %p196 = scmp.eq.s32.totalorder %s44, 0
      %p197 = por %p195, %p196
      %s199 = sadd.s32 %s198, 1
      %p202 = scmp.eq.s32.totalorder %s38, 1
      %p203 = scmp.ne.s32.totalorder %s198, %s200
      %p204 = scmp.eq.s32.totalorder %s38, 0
      %p205 = por %p203, %p204
      %p206 = scmp.ne.s32.totalorder %s198, %s200
      %p207 = scmp.eq.s32.totalorder %s43, 1
      %p208 = por %p206, %p207
      %p209 = scmp.ne.s32.totalorder %s200, %s201
      %p210 = scmp.eq.s32.totalorder %s43, 0
      %p211 = por %p209, %p210
      %p212 = scmp.ne.s32.totalorder %s200, %s201
      %p213 = scmp.eq.s32.totalorder %s44, 1
      %p214 = por %p212, %p213
      %p216 = scmp.ne.s32.totalorder %s201, %s215
      %p217 = scmp.eq.s32.totalorder %s44, 0
      %p218 = por %p216, %p217
      %s220 = sadd.s32 %s219, 1
      %p223 = scmp.eq.s32.totalorder %s38, 1
      %p224 = scmp.ne.s32.totalorder %s219, %s221
      %p225 = scmp.eq.s32.totalorder %s38, 0
      %p226 = por %p224, %p225
      %p227 = scmp.ne.s32.totalorder %s219, %s221
      %p228 = scmp.eq.s32.totalorder %s43, 1
      %p229 = por %p227, %p228
      %p230 = scmp.ne.s32.totalorder %s221, %s222
      %p231 = scmp.eq.s32.totalorder %s43, 0
      %p232 = por %p230, %p231
      %p233 = scmp.ne.s32.totalorder %s221, %s222
      %p234 = scmp.eq.s32.totalorder %s44, 1
      %p235 = por %p233, %p234
      %p237 = scmp.ne.s32.totalorder %s222, %s236
      %p238 = scmp.eq.s32.totalorder %s44, 0
      %p239 = por %p237, %p238
      %s241 = sadd.s32 %s240, 1
      %p244 = scmp.eq.s32.totalorder %s38, 1
      %p245 = scmp.ne.s32.totalorder %s240, %s242
      %p246 = scmp.eq.s32.totalorder %s38, 0
      %p247 = por %p245, %p246
      %p248 = scmp.ne.s32.totalorder %s240, %s242
      %p249 = scmp.eq.s32.totalorder %s43, 1
      %p250 = por %p248, %p249
      %p251 = scmp.ne.s32.totalorder %s242, %s243
      %p252 = scmp.eq.s32.totalorder %s43, 0
      %p253 = por %p251, %p252
      %p254 = scmp.ne.s32.totalorder %s242, %s243
      %p255 = scmp.eq.s32.totalorder %s44, 1
      %p256 = por %p254, %p255
      %p258 = scmp.ne.s32.totalorder %s243, %s257
      %p259 = scmp.eq.s32.totalorder %s44, 0
      %p260 = por %p258, %p259
      %s262 = sadd.s32 %s261, 1
      %p265 = scmp.eq.s32.totalorder %s38, 1
      %p266 = scmp.ne.s32.totalorder %s261, %s263
      %p267 = scmp.eq.s32.totalorder %s38, 0
      %p268 = por %p266, %p267
      %p269 = scmp.ne.s32.totalorder %s261, %s263
      %p270 = scmp.eq.s32.totalorder %s43, 1
      %p271 = por %p269, %p270
      %p272 = scmp.ne.s32.totalorder %s263, %s264
      %p273 = scmp.eq.s32.totalorder %s43, 0
      %p274 = por %p272, %p273
      %p275 = scmp.ne.s32.totalorder %s263, %s264
      %p276 = scmp.eq.s32.totalorder %s44, 1
      %p277 = por %p275, %p276
      %p279 = scmp.ne.s32.totalorder %s264, %s278
      %p280 = scmp.eq.s32.totalorder %s44, 0
      %p281 = por %p279, %p280
      %s283 = sadd.s32 %s282, 1
      %p286 = scmp.eq.s32.totalorder %s38, 1
      %p287 = scmp.ne.s32.totalorder %s282, %s284
      %p288 = scmp.eq.s32.totalorder %s38, 0
      %p289 = por %p287, %p288
      %p290 = scmp.ne.s32.totalorder %s282, %s284
      %p291 = scmp.eq.s32.totalorder %s43, 1
      %p292 = por %p290, %p291
      %p293 = scmp.ne.s32.totalorder %s284, %s285
      %p294 = scmp.eq.s32.totalorder %s43, 0
      %p295 = por %p293, %p294
      %p296 = scmp.ne.s32.totalorder %s284, %s285
      %p297 = scmp.eq.s32.totalorder %s44, 1
      %p298 = por %p296, %p297
      %p300 = scmp.ne.s32.totalorder %s285, %s299
      %p301 = scmp.eq.s32.totalorder %s44, 0
      %p302 = por %p300, %p301
      %s304 = sadd.s32 %s303, 1
      %p307 = scmp.eq.s32.totalorder %s38, 1
      %p308 = scmp.ne.s32.totalorder %s303, %s305
      %p309 = scmp.eq.s32.totalorder %s38, 0
      %p310 = por %p308, %p309
      %p311 = scmp.ne.s32.totalorder %s303, %s305
      %p312 = scmp.eq.s32.totalorder %s43, 1
      %p313 = por %p311, %p312
      %p314 = scmp.ne.s32.totalorder %s305, %s306
      %p315 = scmp.eq.s32.totalorder %s43, 0
      %p316 = por %p314, %p315
      %p317 = scmp.ne.s32.totalorder %s305, %s306
      %p318 = scmp.eq.s32.totalorder %s44, 1
      %p319 = por %p317, %p318
      %p321 = scmp.ne.s32.totalorder %s306, %s320
      %p322 = scmp.eq.s32.totalorder %s44, 0
      %p323 = por %p321, %p322
      %s325 = sadd.s32 %s324, 1
      %p328 = scmp.eq.s32.totalorder %s38, 1
      %p329 = scmp.ne.s32.totalorder %s324, %s326
      %p330 = scmp.eq.s32.totalorder %s38, 0
      %p331 = por %p329, %p330
      %p332 = scmp.ne.s32.totalorder %s324, %s326
      %p333 = scmp.eq.s32.totalorder %s43, 1
      %p334 = por %p332, %p333
      %p335 = scmp.ne.s32.totalorder %s326, %s327
      %p336 = scmp.eq.s32.totalorder %s43, 0
      %p337 = por %p335, %p336
      %p338 = scmp.ne.s32.totalorder %s326, %s327
      %p339 = scmp.eq.s32.totalorder %s44, 1
      %p340 = por %p338, %p339
      %p342 = scmp.ne.s32.totalorder %s327, %s341
      %p343 = scmp.eq.s32.totalorder %s44, 0
      %p344 = por %p342, %p343
      %s346 = sadd.s32 %s345, 1
      %p349 = scmp.eq.s32.totalorder %s38, 1
      %p350 = scmp.ne.s32.totalorder %s345, %s347
      %p351 = scmp.eq.s32.totalorder %s38, 0
      %p352 = por %p350, %p351
      %p353 = scmp.ne.s32.totalorder %s345, %s347
      %p354 = scmp.eq.s32.totalorder %s43, 1
      %p355 = por %p353, %p354
      %p356 = scmp.ne.s32.totalorder %s347, %s348
      %p357 = scmp.eq.s32.totalorder %s43, 0
      %p358 = por %p356, %p357
      %p359 = scmp.ne.s32.totalorder %s347, %s348
      %p360 = scmp.eq.s32.totalorder %s44, 1
      %p361 = por %p359, %p360
      %p363 = scmp.ne.s32.totalorder %s348, %s362
      %p364 = scmp.eq.s32.totalorder %s44, 0
      %p365 = por %p363, %p364
      %s367 = sadd.s32 %s366, 1
      %p370 = scmp.eq.s32.totalorder %s38, 1
      %p371 = scmp.ne.s32.totalorder %s366, %s368
      %p372 = scmp.eq.s32.totalorder %s38, 0
      %p373 = por %p371, %p372
      %p374 = scmp.ne.s32.totalorder %s366, %s368
      %p375 = scmp.eq.s32.totalorder %s43, 1
      %p376 = por %p374, %p375
      %p377 = scmp.ne.s32.totalorder %s368, %s369
      %p378 = scmp.eq.s32.totalorder %s43, 0
      %p379 = por %p377, %p378
      %p380 = scmp.ne.s32.totalorder %s368, %s369
      %p381 = scmp.eq.s32.totalorder %s44, 1
      %p382 = por %p380, %p381
      %p384 = scmp.ne.s32.totalorder %s369, %s383
      %p385 = scmp.eq.s32.totalorder %s44, 0
      %p386 = por %p384, %p385
      %s388 = sadd.s32 %s387, 1
      %p391 = scmp.eq.s32.totalorder %s38, 1
      %p392 = scmp.ne.s32.totalorder %s387, %s389
      %p393 = scmp.eq.s32.totalorder %s38, 0
      %p394 = por %p392, %p393
      %p395 = scmp.ne.s32.totalorder %s387, %s389
      %p396 = scmp.eq.s32.totalorder %s43, 1
      %p397 = por %p395, %p396
      %p398 = scmp.ne.s32.totalorder %s389, %s390
      %p399 = scmp.eq.s32.totalorder %s43, 0
      %p400 = por %p398, %p399
      %p401 = scmp.ne.s32.totalorder %s389, %s390
      %p402 = scmp.eq.s32.totalorder %s44, 1
      %p403 = por %p401, %p402
      %p405 = scmp.ne.s32.totalorder %s390, %s404
      %p406 = scmp.eq.s32.totalorder %s44, 0
      %p407 = por %p405, %p406
      %s408 = ssub.s32 %s38, %s45
      %p409 = scmp.eq.s32.totalorder %s408, 0
      %s411 = sadd.s32 %s410, 1
      %s412 = scalar_select %p409, %s410, %s411
      %p415 = pneg %p409
      %p416 = scmp.eq.s32.totalorder %s38, 1
      %p417 = por %p415, %p416
      %p418 = scmp.ne.s32.totalorder %s410, %s413
      %p419 = scmp.eq.s32.totalorder %s38, 0
      %p420 = por %p418, %p419
      %p421 = scmp.ne.s32.totalorder %s410, %s413
      %p422 = scmp.eq.s32.totalorder %s43, 1
      %p423 = por %p421, %p422
      %p424 = scmp.ne.s32.totalorder %s413, %s414
      %p425 = scmp.eq.s32.totalorder %s43, 0
      %p426 = por %p424, %p425
      %p427 = scmp.ne.s32.totalorder %s413, %s414
      %p428 = scmp.eq.s32.totalorder %s44, 1
      %p429 = por %p427, %p428
      %p431 = scmp.ne.s32.totalorder %s414, %s430
      %p432 = scmp.eq.s32.totalorder %s44, 0
      %p433 = por %p431, %p432
      %s434 = ssub.s32 %s38, %s45
      %p435 = scmp.eq.s32.totalorder %s434, 0
      %s437 = sadd.s32 %s436, 1
      %s438 = scalar_select %p435, %s436, %s437
      %p441 = pneg %p435
      %p442 = scmp.eq.s32.totalorder %s38, 1
      %p443 = por %p441, %p442
      %p444 = scmp.ne.s32.totalorder %s436, %s439
      %p445 = scmp.eq.s32.totalorder %s38, 0
      %p446 = por %p444, %p445
      %p447 = scmp.ne.s32.totalorder %s436, %s439
      %p448 = scmp.eq.s32.totalorder %s43, 1
      %p449 = por %p447, %p448
      %p450 = scmp.ne.s32.totalorder %s439, %s440
      %p451 = scmp.eq.s32.totalorder %s43, 0
      %p452 = por %p450, %p451
      %p453 = scmp.ne.s32.totalorder %s439, %s440
      %p454 = scmp.eq.s32.totalorder %s44, 1
      %p455 = por %p453, %p454
      %p457 = scmp.ne.s32.totalorder %s440, %s456
      %p458 = scmp.eq.s32.totalorder %s44, 0
      %p459 = por %p457, %p458
      %p460 = scmp.le.s32.totalorder 1, %s38
      %p461 = scmp.lt.s32.totalorder %s38, 3
      %p462 = pnand %p460, %p461
      %p463 = pneg %p462
      // Predicated region
      $region9: #{tpu_custom_call.1} parent=5 // pred_check
        _
      $region10: #{tpu_custom_call.1} parent=5 // pred_check_branch
        %465 = sbr.rel (%p462) target = $region12
      $region11: #{tpu_custom_call.1} parent=5 // pred_region
        %s466 = ssub.s32 %s38, 1
        // Predicated region
        $region13: #{tpu_custom_call.1} parent=11 // pred_check
          %p467 = pneg %p85
        $region14: #{tpu_custom_call.1} parent=11 // pred_check_branch
          %469 = sbr.rel (%p467) target = $region16
        $region15: #{tpu_custom_call.1} parent=11 // pred_region
          _
        $region16: #{tpu_custom_call.1} parent=11 // pred_fallthru
          _
        // Predicated region
        $region17: #{tpu_custom_call.1} parent=11 // pred_check
          %p470 = pneg %p106
        $region18: #{tpu_custom_call.1} parent=11 // pred_check_branch
          %472 = sbr.rel (%p470) target = $region20
        $region19: #{tpu_custom_call.1} parent=11 // pred_region
          %s474 = ssub.s32 16, 16
          %475 = vsyncadd [#allocation6], %s474
          %s477 = sshll.u32 [#allocation5], 4
          %s478 = int_to_ptr.vmem [resolvable:$true] %s477
          %480 = dma.hbm_to_vmem [thread:$0]  %s2, 16, %s478, [#allocation6]
        $region20: #{tpu_custom_call.1} parent=11 // pred_fallthru
          _
        // Predicated region
        $region21: #{tpu_custom_call.1} parent=11 // pred_check
          %p481 = pneg %p127
        $region22: #{tpu_custom_call.1} parent=11 // pred_check_branch
          %483 = sbr.rel (%p481) target = $region24
        $region23: #{tpu_custom_call.1} parent=11 // pred_region
          _
        $region24: #{tpu_custom_call.1} parent=11 // pred_fallthru
          _
        // Predicated region
        $region25: #{tpu_custom_call.1} parent=11 // pred_check
          %p484 = pneg %p148
        $region26: #{tpu_custom_call.1} parent=11 // pred_check_branch
          %486 = sbr.rel (%p484) target = $region28
        $region27: #{tpu_custom_call.1} parent=11 // pred_region
          %s488 = ssub.s32 16, 16
          %489 = vsyncadd [#allocation6], %s488
          %s491 = sshll.u32 [#allocation7], 4
          %s492 = int_to_ptr.vmem [resolvable:$true] %s491
          %494 = dma.hbm_to_vmem [thread:$0]  %s4, 16, %s492, [#allocation6]
        $region28: #{tpu_custom_call.1} parent=11 // pred_fallthru
          _
        // Predicated region
        $region29: #{tpu_custom_call.1} parent=11 // pred_check
          %p495 = pneg %p169
        $region30: #{tpu_custom_call.1} parent=11 // pred_check_branch
          %497 = sbr.rel (%p495) target = $region32
        $region31: #{tpu_custom_call.1} parent=11 // pred_region
          _
        $region32: #{tpu_custom_call.1} parent=11 // pred_fallthru
          _
        // Predicated region
        $region33: #{tpu_custom_call.1} parent=11 // pred_check
          %p498 = pneg %p190
        $region34: #{tpu_custom_call.1} parent=11 // pred_check_branch
          %500 = sbr.rel (%p498) target = $region36
        $region35: #{tpu_custom_call.1} parent=11 // pred_region
          %s502 = ssub.s32 16, 16
          %503 = vsyncadd [#allocation9], %s502
          %s505 = sshll.u32 [#allocation8], 4
          %s506 = int_to_ptr.vmem [resolvable:$true] %s505
          %508 = dma.hbm_to_vmem [thread:$0]  %s6, 16, %s506, [#allocation9]
        $region36: #{tpu_custom_call.1} parent=11 // pred_fallthru
          _
        // Predicated region
        $region37: #{tpu_custom_call.1} parent=11 // pred_check
          %p509 = pneg %p211
        $region38: #{tpu_custom_call.1} parent=11 // pred_check_branch
          %511 = sbr.rel (%p509) target = $region40
        $region39: #{tpu_custom_call.1} parent=11 // pred_region
          %s513 = ssub.s32 256, 256
          %514 = vsyncadd [#allocation9], %s513
          %s515 = sshll.u32 [#allocation10], 4
          %s516 = int_to_ptr.vmem [resolvable:$true] %s515
          %521 = dma.hbm_to_vmem [thread:$0]  %s7, 256, %s516, [#allocation9], 64, 64, 4
        $region40: #{tpu_custom_call.1} parent=11 // pred_fallthru
          _
        // Predicated region
        $region41: #{tpu_custom_call.1} parent=11 // pred_check
          %p522 = pneg %p232
        $region42: #{tpu_custom_call.1} parent=11 // pred_check_branch
          %524 = sbr.rel (%p522) target = $region44
        $region43: #{tpu_custom_call.1} parent=11 // pred_region
          %s526 = ssub.s32 16, 16
          %527 = vsyncadd [#allocation12], %s526
          %s529 = sshll.u32 [#allocation11], 4
          %s530 = int_to_ptr.vmem [resolvable:$true] %s529
          %532 = dma.hbm_to_vmem [thread:$0]  %s8, 16, %s530, [#allocation12]
        $region44: #{tpu_custom_call.1} parent=11 // pred_fallthru
          _
        // Predicated region
        $region45: #{tpu_custom_call.1} parent=11 // pred_check
          %p533 = pneg %p253
        $region46: #{tpu_custom_call.1} parent=11 // pred_check_branch
          %535 = sbr.rel (%p533) target = $region48
        $region47: #{tpu_custom_call.1} parent=11 // pred_region
          _
        $region48: #{tpu_custom_call.1} parent=11 // pred_fallthru
          _
        // Predicated region
        $region49: #{tpu_custom_call.1} parent=11 // pred_check
          %p536 = pneg %p274
        $region50: #{tpu_custom_call.1} parent=11 // pred_check_branch
          %538 = sbr.rel (%p536) target = $region52
        $region51: #{tpu_custom_call.1} parent=11 // pred_region
          _
        $region52: #{tpu_custom_call.1} parent=11 // pred_fallthru
          _
        // Predicated region
        $region53: #{tpu_custom_call.1} parent=11 // pred_check
          %p539 = pneg %p295
        $region54: #{tpu_custom_call.1} parent=11 // pred_check_branch
          %541 = sbr.rel (%p539) target = $region56
        $region55: #{tpu_custom_call.1} parent=11 // pred_region
          %s543 = ssub.s32 256, 256
          %544 = vsyncadd [#allocation12], %s543
          %s545 = sshll.u32 [#allocation13], 4
          %s546 = int_to_ptr.vmem [resolvable:$true] %s545
          %551 = dma.hbm_to_vmem [thread:$0]  %s11, 256, %s546, [#allocation12], 64, 64, 4
        $region56: #{tpu_custom_call.1} parent=11 // pred_fallthru
          _
        // Predicated region
        $region57: #{tpu_custom_call.1} parent=11 // pred_check
          %p552 = pneg %p316
        $region58: #{tpu_custom_call.1} parent=11 // pred_check_branch
          %554 = sbr.rel (%p552) target = $region60
        $region59: #{tpu_custom_call.1} parent=11 // pred_region
          _
        $region60: #{tpu_custom_call.1} parent=11 // pred_fallthru
          _
        // Predicated region
        $region61: #{tpu_custom_call.1} parent=11 // pred_check
          %p555 = pneg %p337
        $region62: #{tpu_custom_call.1} parent=11 // pred_check_branch
          %557 = sbr.rel (%p555) target = $region64
        $region63: #{tpu_custom_call.1} parent=11 // pred_region
          %s559 = ssub.s32 512, 512
          %560 = vsyncadd [#allocation15], %s559
          %s561 = sshll.u32 [#allocation14], 4
          %s562 = int_to_ptr.vmem [resolvable:$true] %s561
          %567 = dma.hbm_to_vmem [thread:$0]  %s13, 512, %s562, [#allocation15], 64, 64, 4
        $region64: #{tpu_custom_call.1} parent=11 // pred_fallthru
          _
        // Predicated region
        $region65: #{tpu_custom_call.1} parent=11 // pred_check
          %p568 = pneg %p358
        $region66: #{tpu_custom_call.1} parent=11 // pred_check_branch
          %570 = sbr.rel (%p568) target = $region68
        $region67: #{tpu_custom_call.1} parent=11 // pred_region
          _
        $region68: #{tpu_custom_call.1} parent=11 // pred_fallthru
          _
        // Predicated region
        $region69: #{tpu_custom_call.1} parent=11 // pred_check
          %p571 = pneg %p379
        $region70: #{tpu_custom_call.1} parent=11 // pred_check_branch
          %573 = sbr.rel (%p571) target = $region72
        $region71: #{tpu_custom_call.1} parent=11 // pred_region
          _
        $region72: #{tpu_custom_call.1} parent=11 // pred_fallthru
          _
        // Predicated region
        $region73: #{tpu_custom_call.1} parent=11 // pred_check
          %p574 = pneg %p400
        $region74: #{tpu_custom_call.1} parent=11 // pred_check_branch
          %576 = sbr.rel (%p574) target = $region76
        $region75: #{tpu_custom_call.1} parent=11 // pred_region
          _
        $region76: #{tpu_custom_call.1} parent=11 // pred_fallthru
          _
      $region12: #{tpu_custom_call.1} parent=5 // pred_fallthru
        _
      %p577 = scmp.lt.s32.totalorder %s38, 2
      // Predicated region
      $region77: #{tpu_custom_call.1} parent=5 // pred_check
        %p578 = pneg %p577
      $region78: #{tpu_custom_call.1} parent=5 // pred_check_branch
        %580 = sbr.rel (%p578) target = $region80
      $region79: #{tpu_custom_call.1} parent=5 // pred_region
        // Predicated region
        $region81: #{tpu_custom_call.1} parent=79 // pred_check
          %p581 = pneg %p58
        $region82: #{tpu_custom_call.1} parent=79 // pred_check_branch
          %583 = sbr.rel (%p581) target = $region84
        $region83: #{tpu_custom_call.1} parent=79 // pred_region
          %s584 = sand.u32 %s48, 1
          %s585 = scalar_lea.sflag [#allocation3], %s584
          %s586 = sand.u32 %s48, 1
          %s587 = smul.addr %s586, 256
          %s588 = scalar_lea.vmem [#allocation2], %s587
          %s589 = smul.u32 16, %s38
          %s591 = ssub.s32 4096, 4096
          %592 = vsyncadd %s585, %s591
          %s593 = smul.addr %s589, 2
          %s594 = smul.addr %s593, 128
          %s595 = scalar_lea.hbm %s0, %s594
          %s596 = sshll.u32 %s588, 4
          %s597 = int_to_ptr.vmem [resolvable:$true] %s596
          %602 = dma.hbm_to_vmem [thread:$0]  %s595, 4096, %s597, %s585, 256, 256, 16
        $region84: #{tpu_custom_call.1} parent=79 // pred_fallthru
          _
      $region80: #{tpu_custom_call.1} parent=5 // pred_fallthru
        _
      %p603 = scmp.le.s32.totalorder 1, %s38
      %p604 = scmp.lt.s32.totalorder %s38, 3
      %p605 = pnand %p603, %p604
      %p606 = pneg %p605
      // Predicated region
      $region85: #{tpu_custom_call.1} parent=5 // pred_check
        _
      $region86: #{tpu_custom_call.1} parent=5 // pred_check_branch
        %608 = sbr.rel (%p605) target = $region88
      $region87: #{tpu_custom_call.1} parent=5 // pred_region
        %s609 = ssub.s32 %s38, 1
        %s610 = sand.u32 %s51, 1
        %s611 = scalar_lea.sflag [#allocation3], %s610
        %s612 = sand.u32 %s51, 1
        %s613 = smul.addr %s612, 256
        %s614 = scalar_lea.vmem [#allocation2], %s613
        // Predicated region
        $region89: #{tpu_custom_call.1} parent=87 // pred_check
          %p615 = pneg %p64
        $region90: #{tpu_custom_call.1} parent=87 // pred_check_branch
          %617 = sbr.rel (%p615) target = $region92
        $region91: #{tpu_custom_call.1} parent=87 // pred_region
          %618 = dma.done %s611, 4096
        $region92: #{tpu_custom_call.1} parent=87 // pred_fallthru
          _
        // Predicated region
        $region93: #{tpu_custom_call.1} parent=87 // pred_check
          %p619 = pneg %p106
        $region94: #{tpu_custom_call.1} parent=87 // pred_check_branch
          %621 = sbr.rel (%p619) target = $region96
        $region95: #{tpu_custom_call.1} parent=87 // pred_region
          %622 = dma.done [#allocation6], 16
        $region96: #{tpu_custom_call.1} parent=87 // pred_fallthru
          _
        // Predicated region
        $region97: #{tpu_custom_call.1} parent=87 // pred_check
          %p623 = pneg %p148
        $region98: #{tpu_custom_call.1} parent=87 // pred_check_branch
          %625 = sbr.rel (%p623) target = $region100
        $region99: #{tpu_custom_call.1} parent=87 // pred_region
          %626 = dma.done [#allocation6], 16
        $region100: #{tpu_custom_call.1} parent=87 // pred_fallthru
          _
        // Predicated region
        $region101: #{tpu_custom_call.1} parent=87 // pred_check
          %p627 = pneg %p190
        $region102: #{tpu_custom_call.1} parent=87 // pred_check_branch
          %629 = sbr.rel (%p627) target = $region104
        $region103: #{tpu_custom_call.1} parent=87 // pred_region
          %630 = dma.done [#allocation9], 16
        $region104: #{tpu_custom_call.1} parent=87 // pred_fallthru
          _
        // Predicated region
        $region105: #{tpu_custom_call.1} parent=87 // pred_check
          %p631 = pneg %p211
        $region106: #{tpu_custom_call.1} parent=87 // pred_check_branch
          %633 = sbr.rel (%p631) target = $region108
        $region107: #{tpu_custom_call.1} parent=87 // pred_region
          %634 = dma.done [#allocation9], 256
        $region108: #{tpu_custom_call.1} parent=87 // pred_fallthru
          _
        // Predicated region
        $region109: #{tpu_custom_call.1} parent=87 // pred_check
          %p635 = pneg %p232
        $region110: #{tpu_custom_call.1} parent=87 // pred_check_branch
          %637 = sbr.rel (%p635) target = $region112
        $region111: #{tpu_custom_call.1} parent=87 // pred_region
          %638 = dma.done [#allocation12], 16
        $region112: #{tpu_custom_call.1} parent=87 // pred_fallthru
          _
        // Predicated region
        $region113: #{tpu_custom_call.1} parent=87 // pred_check
          %p639 = pneg %p295
        $region114: #{tpu_custom_call.1} parent=87 // pred_check_branch
          %641 = sbr.rel (%p639) target = $region116
        $region115: #{tpu_custom_call.1} parent=87 // pred_region
          %642 = dma.done [#allocation12], 256
        $region116: #{tpu_custom_call.1} parent=87 // pred_fallthru
          _
        // Predicated region
        $region117: #{tpu_custom_call.1} parent=87 // pred_check
          %p643 = pneg %p337
        $region118: #{tpu_custom_call.1} parent=87 // pred_check_branch
          %645 = sbr.rel (%p643) target = $region120
        $region119: #{tpu_custom_call.1} parent=87 // pred_region
          %646 = dma.done [#allocation15], 512
        $region120: #{tpu_custom_call.1} parent=87 // pred_fallthru
          _
        %s647 = sand.u32 %s51, 1
        %s648 = scalar_lea.sflag [#allocation3], %s647
        %s649 = sand.u32 %s51, 1
        %s650 = smul.addr %s649, 256
        %s651 = scalar_lea.vmem [#allocation2], %s650
        %p652 = pneg %p64
        %p653 = pneg %p61
        %p654 = pneg %p85
        %p655 = pneg %p82
        %p656 = pneg %p106
        %p657 = pneg %p103
        %p658 = pneg %p127
        %p659 = pneg %p124
        %p660 = pneg %p148
        %p661 = pneg %p145
        %p662 = pneg %p169
        %p663 = pneg %p166
        %p664 = pneg %p190
        %p665 = pneg %p187
        %p666 = pneg %p211
        %p667 = pneg %p208
        %p668 = pneg %p232
        %p669 = pneg %p229
        %p670 = pneg %p253
        %p671 = pneg %p250
        %p672 = pneg %p274
        %p673 = pneg %p271
        %p674 = pneg %p295
        %p675 = pneg %p292
        %p676 = pneg %p316
        %p677 = pneg %p313
        %p678 = pneg %p337
        %p679 = pneg %p334
        %p680 = pneg %p358
        %p681 = pneg %p355
        %p682 = pneg %p379
        %p683 = pneg %p376
        %p684 = pneg %p400
        %p685 = pneg %p397
        %p686 = pneg %p426
        %p687 = pneg %p423
        %s688 = sand.u32 %s413, 1
        %s689 = scalar_lea.sflag [#allocation4], %s688
        %s690 = sand.u32 %s413, 1
        %s691 = smul.addr %s690, 128
        %s692 = scalar_lea.vmem [#allocation16], %s691
        %p693 = pneg %p452
        %p694 = pneg %p449
        %s695 = sand.u32 %s439, 1
        %s696 = scalar_lea.sflag [#allocation18], %s695
        %s697 = sand.u32 %s439, 1
        %s698 = smul.addr %s697, 256
        %s699 = scalar_lea.vmem [#allocation17], %s698
        %s700 = smul.u32 16, %s43
        %s701 = smul.u32 16, %s43
        %s702 = smul.u32 16, %s43
        %v704 = vld [vmem:[%s614] sm:$0xff]
        %v705 = vld [vmem:[%s614 + $0x8] sm:$0xff]
        %v706 = vld [vmem:[%s614 + $0x10] sm:$0xff]
        %v707 = vld [vmem:[%s614 + $0x18] sm:$0xff]
        %v708 = vld [vmem:[%s614 + $0x20] sm:$0xff]
        %v709 = vld [vmem:[%s614 + $0x28] sm:$0xff]
        %v710 = vld [vmem:[%s614 + $0x30] sm:$0xff]
        %v711 = vld [vmem:[%s614 + $0x38] sm:$0xff]
        %v712 = vld [vmem:[%s614 + $0x40] sm:$0xff]
        %v713 = vld [vmem:[%s614 + $0x48] sm:$0xff]
        %v714 = vld [vmem:[%s614 + $0x50] sm:$0xff]
        %v715 = vld [vmem:[%s614 + $0x58] sm:$0xff]
        %v716 = vld [vmem:[%s614 + $0x60] sm:$0xff]
        %v717 = vld [vmem:[%s614 + $0x68] sm:$0xff]
        %v718 = vld [vmem:[%s614 + $0x70] sm:$0xff]
        %v719 = vld [vmem:[%s614 + $0x78] sm:$0xff]
        %v720 = vld [vmem:[%s614 + $0x80] sm:$0xff]
        %v721 = vld [vmem:[%s614 + $0x88] sm:$0xff]
        %v722 = vld [vmem:[%s614 + $0x90] sm:$0xff]
        %v723 = vld [vmem:[%s614 + $0x98] sm:$0xff]
        %v724 = vld [vmem:[%s614 + $0xa0] sm:$0xff]
        %v725 = vld [vmem:[%s614 + $0xa8] sm:$0xff]
        %v726 = vld [vmem:[%s614 + $0xb0] sm:$0xff]
        %v727 = vld [vmem:[%s614 + $0xb8] sm:$0xff]
        %v728 = vld [vmem:[%s614 + $0xc0] sm:$0xff]
        %v729 = vld [vmem:[%s614 + $0xc8] sm:$0xff]
        %v730 = vld [vmem:[%s614 + $0xd0] sm:$0xff]
        %v731 = vld [vmem:[%s614 + $0xd8] sm:$0xff]
        %v732 = vld [vmem:[%s614 + $0xe0] sm:$0xff]
        %v733 = vld [vmem:[%s614 + $0xe8] sm:$0xff]
        %v734 = vld [vmem:[%s614 + $0xf0] sm:$0xff]
        %v735 = vld [vmem:[%s614 + $0xf8] sm:$0xff]
        %v736 = vpack.c.bf16 %v706, %v704
        %v737 = vpack.c.bf16 %v707, %v705
        %v738 = vpack.c.bf16 %v710, %v708
        %v739 = vpack.c.bf16 %v711, %v709
        %v740 = vpack.c.bf16 %v714, %v712
        %v741 = vpack.c.bf16 %v715, %v713
        %v742 = vpack.c.bf16 %v718, %v716
        %v743 = vpack.c.bf16 %v719, %v717
        %v744 = vpack.c.bf16 %v722, %v720
        %v745 = vpack.c.bf16 %v723, %v721
        %v746 = vpack.c.bf16 %v726, %v724
        %v747 = vpack.c.bf16 %v727, %v725
        %v748 = vpack.c.bf16 %v730, %v728
        %v749 = vpack.c.bf16 %v731, %v729
        %v750 = vpack.c.bf16 %v734, %v732
        %v751 = vpack.c.bf16 %v735, %v733
        %v752 = vld [vmem:[%s1] sm:$0xf]
        %v753 = vld [vmem:[%s1 + $0x4] sm:$0xf]
        %v754 = vld [vmem:[%s1 + $0x8] sm:$0xf]
        %v755 = vld [vmem:[%s1 + $0xc] sm:$0xf]
        %v756 = vld [vmem:[%s1 + $0x10] sm:$0xf]
        %v757 = vld [vmem:[%s1 + $0x14] sm:$0xf]
        %v758 = vld [vmem:[%s1 + $0x18] sm:$0xf]
        %v759 = vld [vmem:[%s1 + $0x1c] sm:$0xf]
        %v760 = vld [vmem:[%s1 + $0x20] sm:$0xf]
        %v761 = vld [vmem:[%s1 + $0x24] sm:$0xf]
        %v762 = vld [vmem:[%s1 + $0x28] sm:$0xf]
        %v763 = vld [vmem:[%s1 + $0x2c] sm:$0xf]
        %v764 = vld [vmem:[%s1 + $0x30] sm:$0xf]
        %v765 = vld [vmem:[%s1 + $0x34] sm:$0xf]
        %v766 = vld [vmem:[%s1 + $0x38] sm:$0xf]
        %v767 = vld [vmem:[%s1 + $0x3c] sm:$0xf]
        %v768 = vld [vmem:[%s1 + $0x40] sm:$0xf]
        %v769 = vld [vmem:[%s1 + $0x44] sm:$0xf]
        %v770 = vld [vmem:[%s1 + $0x48] sm:$0xf]
        %v771 = vld [vmem:[%s1 + $0x4c] sm:$0xf]
        %v772 = vld [vmem:[%s1 + $0x50] sm:$0xf]
        %v773 = vld [vmem:[%s1 + $0x54] sm:$0xf]
        %v774 = vld [vmem:[%s1 + $0x58] sm:$0xf]
        %v775 = vld [vmem:[%s1 + $0x5c] sm:$0xf]
        %v776 = vld [vmem:[%s1 + $0x60] sm:$0xf]
        %v777 = vld [vmem:[%s1 + $0x64] sm:$0xf]
        %v778 = vld [vmem:[%s1 + $0x68] sm:$0xf]
        %v779 = vld [vmem:[%s1 + $0x6c] sm:$0xf]
        %v780 = vld [vmem:[%s1 + $0x70] sm:$0xf]
        %v781 = vld [vmem:[%s1 + $0x74] sm:$0xf]
        %v782 = vld [vmem:[%s1 + $0x78] sm:$0xf]
        %v783 = vld [vmem:[%s1 + $0x7c] sm:$0xf]
        %v784 = vld [vmem:[#allocation5] sm:$0x1]
        %v786 = vlaneseq
        %v787 = vshrl.u32 %v786, 7
        %v788 = vsub.s32 0, %v787
        %v789 = vrot.slane %v784, %v788
        %v823 = vunpack.c.l.b16 %v752
        %v824 = vunpack.c.l.b16 %v753
        %v825 = vunpack.c.l.b16 %v754
        %v826 = vunpack.c.l.b16 %v755
        %v827 = vunpack.c.l.b16 %v756
        %v828 = vunpack.c.l.b16 %v757
        %v829 = vunpack.c.l.b16 %v758
        %v830 = vunpack.c.l.b16 %v759
        %v831 = vunpack.c.l.b16 %v760
        %v832 = vunpack.c.l.b16 %v761
        %v833 = vunpack.c.l.b16 %v762
        %v834 = vunpack.c.l.b16 %v763
        %v835 = vunpack.c.l.b16 %v764
        %v836 = vunpack.c.l.b16 %v765
        %v837 = vunpack.c.l.b16 %v766
        %v838 = vunpack.c.l.b16 %v767
        %v839 = vunpack.c.l.b16 %v768
        %v840 = vunpack.c.l.b16 %v769
        %v841 = vunpack.c.l.b16 %v770
        %v842 = vunpack.c.l.b16 %v771
        %v843 = vunpack.c.l.b16 %v772
        %v844 = vunpack.c.l.b16 %v773
        %v845 = vunpack.c.l.b16 %v774
        %v846 = vunpack.c.l.b16 %v775
        %v847 = vunpack.c.l.b16 %v776
        %v848 = vunpack.c.l.b16 %v777
        %v849 = vunpack.c.l.b16 %v778
        %v850 = vunpack.c.l.b16 %v779
        %v851 = vunpack.c.l.b16 %v780
        %v852 = vunpack.c.l.b16 %v781
        %v853 = vunpack.c.l.b16 %v782
        %v854 = vunpack.c.l.b16 %v783
        %v855 = vpack.c.b16 %v824, %v823
        %v856 = vpack.c.b16 %v826, %v825
        %v857 = vpack.c.b16 %v828, %v827
        %v858 = vpack.c.b16 %v830, %v829
        %v859 = vpack.c.b16 %v832, %v831
        %v860 = vpack.c.b16 %v834, %v833
        %v861 = vpack.c.b16 %v836, %v835
        %v862 = vpack.c.b16 %v838, %v837
        %v863 = vpack.c.b16 %v840, %v839
        %v864 = vpack.c.b16 %v842, %v841
        %v865 = vpack.c.b16 %v844, %v843
        %v866 = vpack.c.b16 %v846, %v845
        %v867 = vpack.c.b16 %v848, %v847
        %v868 = vpack.c.b16 %v850, %v849
        %v869 = vpack.c.b16 %v852, %v851
        %v870 = vpack.c.b16 %v854, %v853
        %887 = vmatprep.subr.bf16.mxu0 0
        %888 = vmatpush1.bf16.msra.mxu0 %v855
        %889 = vmatprep.subr.bf16.mxu0 0
        %890 = vmatpush1.bf16.msra.mxu0 %v856
        %891 = vmatprep.subr.bf16.mxu0 0
        %892 = vmatpush1.bf16.msra.mxu0 %v857
        %893 = vmatprep.subr.bf16.mxu0 0
        %894 = vmatpush1.bf16.msra.mxu0 %v858
        %895 = vmatprep.subr.bf16.mxu0 0
        %896 = vmatpush1.bf16.msra.mxu0 %v859
        %897 = vmatprep.subr.bf16.mxu0 0
        %898 = vmatpush1.bf16.msra.mxu0 %v860
        %899 = vmatprep.subr.bf16.mxu0 0
        %900 = vmatpush1.bf16.msra.mxu0 %v861
        %901 = vmatprep.subr.bf16.mxu0 0
        %902 = vmatpush1.bf16.msra.mxu0 %v862
        %903 = vmatprep.subr.bf16.mxu0 0
        %904 = vmatpush1.bf16.msra.mxu0 %v863
        %905 = vmatprep.subr.bf16.mxu0 0
        %906 = vmatpush1.bf16.msra.mxu0 %v864
        %907 = vmatprep.subr.bf16.mxu0 0
        %908 = vmatpush1.bf16.msra.mxu0 %v865
        %909 = vmatprep.subr.bf16.mxu0 0
        %910 = vmatpush1.bf16.msra.mxu0 %v866
        %911 = vmatprep.subr.bf16.mxu0 0
        %912 = vmatpush1.bf16.msra.mxu0 %v867
        %913 = vmatprep.subr.bf16.mxu0 0
        %914 = vmatpush1.bf16.msra.mxu0 %v868
        %915 = vmatprep.subr.bf16.mxu0 0
        %916 = vmatpush1.bf16.msra.mxu0 %v869
        %917 = vmatprep.subr.bf16.mxu0 0
        %918 = vmatpush1.bf16.msra.mxu0 %v870
        %919 = vmatprep.mubr.bf16.mxu0 %v737
        %920 = vmatmul.mubr.bf16.gmra.mrb[0].mxu0 %v736
        %v921 = vpop.f32.mrb[0].mxu0
        %v922 = vadd.f32 %v789, %v921
        %v923 = vpop.f32.mrb[0].mxu0
        %v924 = vpop.f32.mrb[0].mxu0
        %v925 = vadd.f32 %v789, %v924
        %v926 = vpop.f32.mrb[0].mxu0
        %927 = vmatprep.mubr.bf16.mxu0 %v739
        %928 = vmatmul.mubr.bf16.gmra.mrb[0].mxu0 %v738
        %v929 = vpop.f32.mrb[0].mxu0
        %v930 = vadd.f32 %v789, %v929
        %v931 = vpop.f32.mrb[0].mxu0
        %v932 = vpop.f32.mrb[0].mxu0
        %v933 = vadd.f32 %v789, %v932
        %v934 = vpop.f32.mrb[0].mxu0
        %935 = vmatprep.mubr.bf16.mxu0 %v741
        %936 = vmatmul.mubr.bf16.gmra.mrb[0].mxu0 %v740
        %v937 = vpop.f32.mrb[0].mxu0
        %v938 = vadd.f32 %v789, %v937
        %v939 = vpop.f32.mrb[0].mxu0
        %v940 = vpop.f32.mrb[0].mxu0
        %v941 = vadd.f32 %v789, %v940
        %v942 = vpop.f32.mrb[0].mxu0
        %943 = vmatprep.mubr.bf16.mxu0 %v743
        %944 = vmatmul.mubr.bf16.gmra.mrb[0].mxu0 %v742
        %v945 = vpop.f32.mrb[0].mxu0
        %v946 = vadd.f32 %v789, %v945
        %v947 = vpop.f32.mrb[0].mxu0
        %v948 = vpop.f32.mrb[0].mxu0
        %v949 = vadd.f32 %v789, %v948
        %v950 = vpop.f32.mrb[0].mxu0
        %951 = vmatprep.mubr.bf16.mxu0 %v745
        %952 = vmatmul.mubr.bf16.gmra.mrb[0].mxu0 %v744
        %v953 = vpop.f32.mrb[0].mxu0
        %v954 = vadd.f32 %v789, %v953
        %v955 = vpop.f32.mrb[0].mxu0
        %v956 = vpop.f32.mrb[0].mxu0
        %v957 = vadd.f32 %v789, %v956
        %v958 = vpop.f32.mrb[0].mxu0
        %959 = vmatprep.mubr.bf16.mxu0 %v747
        %960 = vmatmul.mubr.bf16.gmra.mrb[0].mxu0 %v746
        %v961 = vpop.f32.mrb[0].mxu0
        %v962 = vadd.f32 %v789, %v961
        %v963 = vpop.f32.mrb[0].mxu0
        %v964 = vpop.f32.mrb[0].mxu0
        %v965 = vadd.f32 %v789, %v964
        %v966 = vpop.f32.mrb[0].mxu0
        %967 = vmatprep.mubr.bf16.mxu0 %v749
        %968 = vmatmul.mubr.bf16.gmra.mrb[0].mxu0 %v748
        %v969 = vpop.f32.mrb[0].mxu0
        %v970 = vadd.f32 %v789, %v969
        %v971 = vpop.f32.mrb[0].mxu0
        %v972 = vpop.f32.mrb[0].mxu0
        %v973 = vadd.f32 %v789, %v972
        %v974 = vpop.f32.mrb[0].mxu0
        %975 = vmatprep.mubr.bf16.mxu0 %v751
        %976 = vmatmul.mubr.bf16.gmra.mrb[0].mxu0 %v750
        %v977 = vpop.f32.mrb[0].mxu0
        %v978 = vadd.f32 %v789, %v977
        %v979 = vpop.f32.mrb[0].mxu0
        %v980 = vpop.f32.mrb[0].mxu0
        %v981 = vadd.f32 %v789, %v980
        %v982 = vpop.f32.mrb[0].mxu0
        %983 = vdwg.mxu0
        %v984 = vmax.f32 %v922, 0.0
        %v985 = vmax.f32 %v925, 0.0
        %v986 = vmax.f32 %v930, 0.0
        %v987 = vmax.f32 %v933, 0.0
        %v988 = vmax.f32 %v938, 0.0
        %v989 = vmax.f32 %v941, 0.0
        %v990 = vmax.f32 %v946, 0.0
        %v991 = vmax.f32 %v949, 0.0
        %v992 = vmax.f32 %v954, 0.0
        %v993 = vmax.f32 %v957, 0.0
        %v994 = vmax.f32 %v962, 0.0
        %v995 = vmax.f32 %v965, 0.0
        %v996 = vmax.f32 %v970, 0.0
        %v997 = vmax.f32 %v973, 0.0
        %v998 = vmax.f32 %v978, 0.0
        %v999 = vmax.f32 %v981, 0.0
        %v1000 = vpack.c.bf16 %v985, %v984
        %v1001 = vpack.c.bf16 %v987, %v986
        %v1002 = vpack.c.bf16 %v989, %v988
        %v1003 = vpack.c.bf16 %v991, %v990
        %v1004 = vpack.c.bf16 %v993, %v992
        %v1005 = vpack.c.bf16 %v995, %v994
        %v1006 = vpack.c.bf16 %v997, %v996
        %v1007 = vpack.c.bf16 %v999, %v998
        %v1008 = vld [vmem:[%s3] sm:$0xf]
        %v1009 = vld [vmem:[%s3 + $0x4] sm:$0xf]
        %v1010 = vld [vmem:[%s3 + $0x8] sm:$0xf]
        %v1011 = vld [vmem:[%s3 + $0xc] sm:$0xf]
        %v1012 = vld [vmem:[%s3 + $0x10] sm:$0xf]
        %v1013 = vld [vmem:[%s3 + $0x14] sm:$0xf]
        %v1014 = vld [vmem:[%s3 + $0x18] sm:$0xf]
        %v1015 = vld [vmem:[%s3 + $0x1c] sm:$0xf]
        %v1016 = vld [vmem:[%s3 + $0x20] sm:$0xf]
        %v1017 = vld [vmem:[%s3 + $0x24] sm:$0xf]
        %v1018 = vld [vmem:[%s3 + $0x28] sm:$0xf]
        %v1019 = vld [vmem:[%s3 + $0x2c] sm:$0xf]
        %v1020 = vld [vmem:[%s3 + $0x30] sm:$0xf]
        %v1021 = vld [vmem:[%s3 + $0x34] sm:$0xf]
        %v1022 = vld [vmem:[%s3 + $0x38] sm:$0xf]
        %v1023 = vld [vmem:[%s3 + $0x3c] sm:$0xf]
        %v1024 = vld [vmem:[#allocation7] sm:$0x1]
        %v1026 = vlaneseq
        %v1027 = vshrl.u32 %v1026, 7
        %v1028 = vsub.s32 0, %v1027
        %v1029 = vrot.slane %v1024, %v1028
        %v1047 = vunpack.c.l.b16 %v1008
        %v1048 = vunpack.c.l.b16 %v1009
        %v1049 = vunpack.c.l.b16 %v1010
        %v1050 = vunpack.c.l.b16 %v1011
        %v1051 = vunpack.c.l.b16 %v1012
        %v1052 = vunpack.c.l.b16 %v1013
        %v1053 = vunpack.c.l.b16 %v1014
        %v1054 = vunpack.c.l.b16 %v1015
        %v1055 = vunpack.c.l.b16 %v1016
        %v1056 = vunpack.c.l.b16 %v1017
        %v1057 = vunpack.c.l.b16 %v1018
        %v1058 = vunpack.c.l.b16 %v1019
        %v1059 = vunpack.c.l.b16 %v1020
        %v1060 = vunpack.c.l.b16 %v1021
        %v1061 = vunpack.c.l.b16 %v1022
        %v1062 = vunpack.c.l.b16 %v1023
        %v1063 = vpack.c.b16 %v1048, %v1047
        %v1064 = vpack.c.b16 %v1050, %v1049
        %v1065 = vpack.c.b16 %v1052, %v1051
        %v1066 = vpack.c.b16 %v1054, %v1053
        %v1067 = vpack.c.b16 %v1056, %v1055
        %v1068 = vpack.c.b16 %v1058, %v1057
        %v1069 = vpack.c.b16 %v1060, %v1059
        %v1070 = vpack.c.b16 %v1062, %v1061
        %1079 = vmatprep.subr.bf16.mxu0 0
        %1080 = vmatpush1.bf16.msra.mxu0 %v1063
        %1081 = vmatprep.subr.bf16.mxu0 0
        %1082 = vmatpush1.bf16.msra.mxu0 %v1064
        %1083 = vmatprep.subr.bf16.mxu0 0
        %1084 = vmatpush1.bf16.msra.mxu0 %v1065
        %1085 = vmatprep.subr.bf16.mxu0 0
        %1086 = vmatpush1.bf16.msra.mxu0 %v1066
        %1087 = vmatprep.subr.bf16.mxu0 0
        %1088 = vmatpush1.bf16.msra.mxu0 %v1067
        %1089 = vmatprep.subr.bf16.mxu0 0
        %1090 = vmatpush1.bf16.msra.mxu0 %v1068
        %1091 = vmatprep.subr.bf16.mxu0 0
        %1092 = vmatpush1.bf16.msra.mxu0 %v1069
        %1093 = vmatprep.subr.bf16.mxu0 0
        %1094 = vmatpush1.bf16.msra.mxu0 %v1070
        %1095 = vmatprep.subr.bf16.mxu0 0
        %1096 = vmatpush1.bf16.msra.mxu0 0
        %1097 = vmatprep.subr.bf16.mxu0 0
        %1098 = vmatpush1.bf16.msra.mxu0 0
        %1099 = vmatprep.subr.bf16.mxu0 0
        %1100 = vmatpush1.bf16.msra.mxu0 0
        %1101 = vmatprep.subr.bf16.mxu0 0
        %1102 = vmatpush1.bf16.msra.mxu0 0
        %1103 = vmatprep.subr.bf16.mxu0 0
        %1104 = vmatpush1.bf16.msra.mxu0 0
        %1105 = vmatprep.subr.bf16.mxu0 0
        %1106 = vmatpush1.bf16.msra.mxu0 0
        %1107 = vmatprep.subr.bf16.mxu0 0
        %1108 = vmatpush1.bf16.msra.mxu0 0
        %1109 = vmatprep.subr.bf16.mxu0 0
        %1110 = vmatpush1.bf16.msra.mxu0 0
        %1111 = vmatprep.mubr.bf16.mxu0 0
        %1112 = vmatmul.mubr.bf16.gmra.mrb[0].mxu0 %v1000
        %v1113 = vpop.f32.mrb[0].mxu0
        %v1114 = vadd.f32 %v1029, %v1113
        %v1115 = vpop.f32.mrb[0].mxu0
        %v1116 = vpop.f32.mrb[0].mxu0
        %v1117 = vadd.f32 %v1029, %v1116
        %v1118 = vpop.f32.mrb[0].mxu0
        %1119 = vmatprep.mubr.bf16.mxu0 0
        %1120 = vmatmul.mubr.bf16.gmra.mrb[0].mxu0 %v1001
        %v1121 = vpop.f32.mrb[0].mxu0
        %v1122 = vadd.f32 %v1029, %v1121
        %v1123 = vpop.f32.mrb[0].mxu0
        %v1124 = vpop.f32.mrb[0].mxu0
        %v1125 = vadd.f32 %v1029, %v1124
        %v1126 = vpop.f32.mrb[0].mxu0
        %1127 = vmatprep.mubr.bf16.mxu0 0
        %1128 = vmatmul.mubr.bf16.gmra.mrb[0].mxu0 %v1002
        %v1129 = vpop.f32.mrb[0].mxu0
        %v1130 = vadd.f32 %v1029, %v1129
        %v1131 = vpop.f32.mrb[0].mxu0
        %v1132 = vpop.f32.mrb[0].mxu0
        %v1133 = vadd.f32 %v1029, %v1132
        %v1134 = vpop.f32.mrb[0].mxu0
        %1135 = vmatprep.mubr.bf16.mxu0 0
        %1136 = vmatmul.mubr.bf16.gmra.mrb[0].mxu0 %v1003
        %v1137 = vpop.f32.mrb[0].mxu0
        %v1138 = vadd.f32 %v1029, %v1137
        %v1139 = vpop.f32.mrb[0].mxu0
        %v1140 = vpop.f32.mrb[0].mxu0
        %v1141 = vadd.f32 %v1029, %v1140
        %v1142 = vpop.f32.mrb[0].mxu0
        %1143 = vmatprep.mubr.bf16.mxu0 0
        %1144 = vmatmul.mubr.bf16.gmra.mrb[0].mxu0 %v1004
        %v1145 = vpop.f32.mrb[0].mxu0
        %v1146 = vadd.f32 %v1029, %v1145
        %v1147 = vpop.f32.mrb[0].mxu0
        %v1148 = vpop.f32.mrb[0].mxu0
        %v1149 = vadd.f32 %v1029, %v1148
        %v1150 = vpop.f32.mrb[0].mxu0
        %1151 = vmatprep.mubr.bf16.mxu0 0
        %1152 = vmatmul.mubr.bf16.gmra.mrb[0].mxu0 %v1005
        %v1153 = vpop.f32.mrb[0].mxu0
        %v1154 = vadd.f32 %v1029, %v1153
        %v1155 = vpop.f32.mrb[0].mxu0
        %v1156 = vpop.f32.mrb[0].mxu0
        %v1157 = vadd.f32 %v1029, %v1156
        %v1158 = vpop.f32.mrb[0].mxu0
        %1159 = vmatprep.mubr.bf16.mxu0 0
        %1160 = vmatmul.mubr.bf16.gmra.mrb[0].mxu0 %v1006
        %v1161 = vpop.f32.mrb[0].mxu0
        %v1162 = vadd.f32 %v1029, %v1161
        %v1163 = vpop.f32.mrb[0].mxu0
        %v1164 = vpop.f32.mrb[0].mxu0
        %v1165 = vadd.f32 %v1029, %v1164
        %v1166 = vpop.f32.mrb[0].mxu0
        %1167 = vmatprep.mubr.bf16.mxu0 0
        %1168 = vmatmul.mubr.bf16.gmra.mrb[0].mxu0 %v1007
        %v1169 = vpop.f32.mrb[0].mxu0
        %v1170 = vadd.f32 %v1029, %v1169
        %v1171 = vpop.f32.mrb[0].mxu0
        %v1172 = vpop.f32.mrb[0].mxu0
        %v1173 = vadd.f32 %v1029, %v1172
        %v1174 = vpop.f32.mrb[0].mxu0
        %1175 = vdwg.mxu0
        %v1176 = vmax.f32 %v1114, 0.0
        %v1177 = vmax.f32 %v1117, 0.0
        %v1178 = vmax.f32 %v1122, 0.0
        %v1179 = vmax.f32 %v1125, 0.0
        %v1180 = vmax.f32 %v1130, 0.0
        %v1181 = vmax.f32 %v1133, 0.0
        %v1182 = vmax.f32 %v1138, 0.0
        %v1183 = vmax.f32 %v1141, 0.0
        %v1184 = vmax.f32 %v1146, 0.0
        %v1185 = vmax.f32 %v1149, 0.0
        %v1186 = vmax.f32 %v1154, 0.0
        %v1187 = vmax.f32 %v1157, 0.0
        %v1188 = vmax.f32 %v1162, 0.0
        %v1189 = vmax.f32 %v1165, 0.0
        %v1190 = vmax.f32 %v1170, 0.0
        %v1191 = vmax.f32 %v1173, 0.0
        %v1192 = vpack.c.bf16 %v1177, %v1176
        %v1193 = vpack.c.bf16 %v1179, %v1178
        %v1194 = vpack.c.bf16 %v1181, %v1180
        %v1195 = vpack.c.bf16 %v1183, %v1182
        %v1196 = vpack.c.bf16 %v1185, %v1184
        %v1197 = vpack.c.bf16 %v1187, %v1186
        %v1198 = vpack.c.bf16 %v1189, %v1188
        %v1199 = vpack.c.bf16 %v1191, %v1190
        %v1200 = vld [vmem:[%s5] sm:$0xf]
        %v1201 = vld [vmem:[%s5 + $0x4] sm:$0xf]
        %v1202 = vld [vmem:[%s5 + $0x8] sm:$0xf]
        %v1203 = vld [vmem:[%s5 + $0xc] sm:$0xf]
        %v1204 = vld [vmem:[%s5 + $0x10] sm:$0xf]
        %v1205 = vld [vmem:[%s5 + $0x14] sm:$0xf]
        %v1206 = vld [vmem:[%s5 + $0x18] sm:$0xf]
        %v1207 = vld [vmem:[%s5 + $0x1c] sm:$0xf]
        %v1208 = vld [vmem:[#allocation8] sm:$0x1]
        %v1210 = vlaneseq
        %v1211 = vshrl.u32 %v1210, 7
        %v1212 = vsub.s32 0, %v1211
        %v1213 = vrot.slane %v1208, %v1212
        %v1223 = vunpack.c.l.b16 %v1200
        %v1224 = vunpack.c.l.b16 %v1201
        %v1225 = vunpack.c.l.b16 %v1202
        %v1226 = vunpack.c.l.b16 %v1203
        %v1227 = vunpack.c.l.b16 %v1204
        %v1228 = vunpack.c.l.b16 %v1205
        %v1229 = vunpack.c.l.b16 %v1206
        %v1230 = vunpack.c.l.b16 %v1207
        %v1231 = vpack.c.b16 %v1224, %v1223
        %v1232 = vpack.c.b16 %v1226, %v1225
        %v1233 = vpack.c.b16 %v1228, %v1227
        %v1234 = vpack.c.b16 %v1230, %v1229
        %vm1239 = vcmask 523264
        %v1241 = vsel %vm1239, %v1192, 0
        %v1244 = vsel %vm1239, %v1193, 0
        %v1247 = vsel %vm1239, %v1194, 0
        %v1250 = vsel %vm1239, %v1195, 0
        %v1253 = vsel %vm1239, %v1196, 0
        %v1256 = vsel %vm1239, %v1197, 0
        %v1259 = vsel %vm1239, %v1198, 0
        %v1262 = vsel %vm1239, %v1199, 0
        %1264 = vmatprep.subr.bf16.mxu0 0
        %1265 = vmatpush1.bf16.msra.mxu0 %v1231
        %1266 = vmatprep.subr.bf16.mxu0 0
        %1267 = vmatpush1.bf16.msra.mxu0 %v1232
        %1268 = vmatprep.subr.bf16.mxu0 0
        %1269 = vmatpush1.bf16.msra.mxu0 %v1233
        %1270 = vmatprep.subr.bf16.mxu0 0
        %1271 = vmatpush1.bf16.msra.mxu0 %v1234
        %1272 = vmatprep.subr.bf16.mxu0 0
        %1273 = vmatpush1.bf16.msra.mxu0 0
        %1274 = vmatprep.subr.bf16.mxu0 0
        %1275 = vmatpush1.bf16.msra.mxu0 0
        %1276 = vmatprep.subr.bf16.mxu0 0
        %1277 = vmatpush1.bf16.msra.mxu0 0
        %1278 = vmatprep.subr.bf16.mxu0 0
        %1279 = vmatpush1.bf16.msra.mxu0 0
        %1280 = vmatprep.subr.bf16.mxu0 0
        %1281 = vmatpush1.bf16.msra.mxu0 0
        %1282 = vmatprep.subr.bf16.mxu0 0
        %1283 = vmatpush1.bf16.msra.mxu0 0
        %1284 = vmatprep.subr.bf16.mxu0 0
        %1285 = vmatpush1.bf16.msra.mxu0 0
        %1286 = vmatprep.subr.bf16.mxu0 0
        %1287 = vmatpush1.bf16.msra.mxu0 0
        %1288 = vmatprep.subr.bf16.mxu0 0
        %1289 = vmatpush1.bf16.msra.mxu0 0
        %1290 = vmatprep.subr.bf16.mxu0 0
        %1291 = vmatpush1.bf16.msra.mxu0 0
        %1292 = vmatprep.subr.bf16.mxu0 0
        %1293 = vmatpush1.bf16.msra.mxu0 0
        %1294 = vmatprep.subr.bf16.mxu0 0
        %1295 = vmatpush1.bf16.msra.mxu0 0
        %1296 = vmatprep.mubr.bf16.mxu0 0
        %1297 = vmatmul.mubr.bf16.gmra.mrb[0].mxu0 %v1241
        %v1298 = vpop.f32.mrb[0].mxu0
        %v1299 = vadd.f32 %v1213, %v1298
        %v1300 = vpop.f32.mrb[0].mxu0
        %v1301 = vpop.f32.mrb[0].mxu0
        %v1302 = vadd.f32 %v1213, %v1301
        %v1303 = vpop.f32.mrb[0].mxu0
        %1304 = vmatprep.mubr.bf16.mxu0 0
        %1305 = vmatmul.mubr.bf16.gmra.mrb[0].mxu0 %v1244
        %v1306 = vpop.f32.mrb[0].mxu0
        %v1307 = vadd.f32 %v1213, %v1306
        %v1308 = vpop.f32.mrb[0].mxu0
        %v1309 = vpop.f32.mrb[0].mxu0
        %v1310 = vadd.f32 %v1213, %v1309
        %v1311 = vpop.f32.mrb[0].mxu0
        %1312 = vmatprep.mubr.bf16.mxu0 0
        %1313 = vmatmul.mubr.bf16.gmra.mrb[0].mxu0 %v1247
        %v1314 = vpop.f32.mrb[0].mxu0
        %v1315 = vadd.f32 %v1213, %v1314
        %v1316 = vpop.f32.mrb[0].mxu0
        %v1317 = vpop.f32.mrb[0].mxu0
        %v1318 = vadd.f32 %v1213, %v1317
        %v1319 = vpop.f32.mrb[0].mxu0
        %1320 = vmatprep.mubr.bf16.mxu0 0
        %1321 = vmatmul.mubr.bf16.gmra.mrb[0].mxu0 %v1250
        %v1322 = vpop.f32.mrb[0].mxu0
        %v1323 = vadd.f32 %v1213, %v1322
        %v1324 = vpop.f32.mrb[0].mxu0
        %v1325 = vpop.f32.mrb[0].mxu0
        %v1326 = vadd.f32 %v1213, %v1325
        %v1327 = vpop.f32.mrb[0].mxu0
        %1328 = vmatprep.mubr.bf16.mxu0 0
        %1329 = vmatmul.mubr.bf16.gmra.mrb[0].mxu0 %v1253
        %v1330 = vpop.f32.mrb[0].mxu0
        %v1331 = vadd.f32 %v1213, %v1330
        %v1332 = vpop.f32.mrb[0].mxu0
        %v1333 = vpop.f32.mrb[0].mxu0
        %v1334 = vadd.f32 %v1213, %v1333
        %v1335 = vpop.f32.mrb[0].mxu0
        %1336 = vmatprep.mubr.bf16.mxu0 0
        %1337 = vmatmul.mubr.bf16.gmra.mrb[0].mxu0 %v1256
        %v1338 = vpop.f32.mrb[0].mxu0
        %v1339 = vadd.f32 %v1213, %v1338
        %v1340 = vpop.f32.mrb[0].mxu0
        %v1341 = vpop.f32.mrb[0].mxu0
        %v1342 = vadd.f32 %v1213, %v1341
        %v1343 = vpop.f32.mrb[0].mxu0
        %1344 = vmatprep.mubr.bf16.mxu0 0
        %1345 = vmatmul.mubr.bf16.gmra.mrb[0].mxu0 %v1259
        %v1346 = vpop.f32.mrb[0].mxu0
        %v1347 = vadd.f32 %v1213, %v1346
        %v1348 = vpop.f32.mrb[0].mxu0
        %v1349 = vpop.f32.mrb[0].mxu0
        %v1350 = vadd.f32 %v1213, %v1349
        %v1351 = vpop.f32.mrb[0].mxu0
        %1352 = vmatprep.mubr.bf16.mxu0 0
        %1353 = vmatmul.mubr.bf16.gmra.mrb[0].mxu0 %v1262
        %v1354 = vpop.f32.mrb[0].mxu0
        %v1355 = vadd.f32 %v1213, %v1354
        %v1356 = vpop.f32.mrb[0].mxu0
        %v1357 = vpop.f32.mrb[0].mxu0
        %v1358 = vadd.f32 %v1213, %v1357
        %v1359 = vpop.f32.mrb[0].mxu0
        %1360 = vdwg.mxu0
        %v1361 = vmax.f32 %v1299, 0.0
        %v1362 = vmax.f32 %v1302, 0.0
        %v1363 = vmax.f32 %v1307, 0.0
        %v1364 = vmax.f32 %v1310, 0.0
        %v1365 = vmax.f32 %v1315, 0.0
        %v1366 = vmax.f32 %v1318, 0.0
        %v1367 = vmax.f32 %v1323, 0.0
        %v1368 = vmax.f32 %v1326, 0.0
        %v1369 = vmax.f32 %v1331, 0.0
        %v1370 = vmax.f32 %v1334, 0.0
        %v1371 = vmax.f32 %v1339, 0.0
        %v1372 = vmax.f32 %v1342, 0.0
        %v1373 = vmax.f32 %v1347, 0.0
        %v1374 = vmax.f32 %v1350, 0.0
        %v1375 = vmax.f32 %v1355, 0.0
        %v1376 = vmax.f32 %v1358, 0.0
        %v1377 = vpack.c.bf16 %v1362, %v1361
        %v1378 = vpack.c.bf16 %v1364, %v1363
        %v1379 = vpack.c.bf16 %v1366, %v1365
        %v1380 = vpack.c.bf16 %v1368, %v1367
        %v1381 = vpack.c.bf16 %v1370, %v1369
        %v1382 = vpack.c.bf16 %v1372, %v1371
        %v1383 = vpack.c.bf16 %v1374, %v1373
        %v1384 = vpack.c.bf16 %v1376, %v1375
        %v1385 = vld [vmem:[#allocation10] sm:$0xf]
        %v1386 = vld [vmem:[#allocation10 + $0x4] sm:$0xf]
        %v1387 = vld [vmem:[#allocation10 + $0x8] sm:$0xf]
        %v1388 = vld [vmem:[#allocation10 + $0xc] sm:$0xf]
        %v1389 = vld [vmem:[#allocation11] sm:$0x1]
        %v1391 = vlaneseq
        %v1392 = vshrl.u32 %v1391, 7
        %v1393 = vsub.s32 0, %v1392
        %v1394 = vrot.slane %v1389, %v1393
        %v1400 = vunpack.c.l.b16 %v1385
        %v1401 = vunpack.c.l.b16 %v1386
        %v1402 = vunpack.c.l.b16 %v1387
        %v1403 = vunpack.c.l.b16 %v1388
        %v1404 = vpack.c.b16 %v1401, %v1400
        %v1405 = vpack.c.b16 %v1403, %v1402
        %vm1408 = vcmask 261120
        %v1410 = vsel %vm1408, %v1377, 0
        %v1413 = vsel %vm1408, %v1378, 0
        %v1416 = vsel %vm1408, %v1379, 0
        %v1419 = vsel %vm1408, %v1380, 0
        %v1422 = vsel %vm1408, %v1381, 0
        %v1425 = vsel %vm1408, %v1382, 0
        %v1428 = vsel %vm1408, %v1383, 0
        %v1431 = vsel %vm1408, %v1384, 0
        %1433 = vmatprep.subr.bf16.mxu0 0
        %1434 = vmatpush1.bf16.msra.mxu0 %v1404
        %1435 = vmatprep.subr.bf16.mxu0 0
        %1436 = vmatpush1.bf16.msra.mxu0 %v1405
        %1437 = vmatprep.subr.bf16.mxu0 0
        %1438 = vmatpush1.bf16.msra.mxu0 0
        %1439 = vmatprep.subr.bf16.mxu0 0
        %1440 = vmatpush1.bf16.msra.mxu0 0
        %1441 = vmatprep.subr.bf16.mxu0 0
        %1442 = vmatpush1.bf16.msra.mxu0 0
        %1443 = vmatprep.subr.bf16.mxu0 0
        %1444 = vmatpush1.bf16.msra.mxu0 0
        %1445 = vmatprep.subr.bf16.mxu0 0
        %1446 = vmatpush1.bf16.msra.mxu0 0
        %1447 = vmatprep.subr.bf16.mxu0 0
        %1448 = vmatpush1.bf16.msra.mxu0 0
        %1449 = vmatprep.subr.bf16.mxu0 0
        %1450 = vmatpush1.bf16.msra.mxu0 0
        %1451 = vmatprep.subr.bf16.mxu0 0
        %1452 = vmatpush1.bf16.msra.mxu0 0
        %1453 = vmatprep.subr.bf16.mxu0 0
        %1454 = vmatpush1.bf16.msra.mxu0 0
        %1455 = vmatprep.subr.bf16.mxu0 0
        %1456 = vmatpush1.bf16.msra.mxu0 0
        %1457 = vmatprep.subr.bf16.mxu0 0
        %1458 = vmatpush1.bf16.msra.mxu0 0
        %1459 = vmatprep.subr.bf16.mxu0 0
        %1460 = vmatpush1.bf16.msra.mxu0 0
        %1461 = vmatprep.subr.bf16.mxu0 0
        %1462 = vmatpush1.bf16.msra.mxu0 0
        %1463 = vmatprep.subr.bf16.mxu0 0
        %1464 = vmatpush1.bf16.msra.mxu0 0
        %1465 = vmatprep.mubr.bf16.mxu0 0
        %1466 = vmatmul.mubr.bf16.gmra.mrb[0].mxu0 %v1410
        %v1467 = vpop.f32.mrb[0].mxu0
        %v1468 = vadd.f32 %v1394, %v1467
        %v1469 = vpop.f32.mrb[0].mxu0
        %v1470 = vpop.f32.mrb[0].mxu0
        %v1471 = vadd.f32 %v1394, %v1470
        %v1472 = vpop.f32.mrb[0].mxu0
        %1473 = vmatprep.mubr.bf16.mxu0 0
        %1474 = vmatmul.mubr.bf16.gmra.mrb[0].mxu0 %v1413
        %v1475 = vpop.f32.mrb[0].mxu0
        %v1476 = vadd.f32 %v1394, %v1475
        %v1477 = vpop.f32.mrb[0].mxu0
        %v1478 = vpop.f32.mrb[0].mxu0
        %v1479 = vadd.f32 %v1394, %v1478
        %v1480 = vpop.f32.mrb[0].mxu0
        %1481 = vmatprep.mubr.bf16.mxu0 0
        %1482 = vmatmul.mubr.bf16.gmra.mrb[0].mxu0 %v1416
        %v1483 = vpop.f32.mrb[0].mxu0
        %v1484 = vadd.f32 %v1394, %v1483
        %v1485 = vpop.f32.mrb[0].mxu0
        %v1486 = vpop.f32.mrb[0].mxu0
        %v1487 = vadd.f32 %v1394, %v1486
        %v1488 = vpop.f32.mrb[0].mxu0
        %1489 = vmatprep.mubr.bf16.mxu0 0
        %1490 = vmatmul.mubr.bf16.gmra.mrb[0].mxu0 %v1419
        %v1491 = vpop.f32.mrb[0].mxu0
        %v1492 = vadd.f32 %v1394, %v1491
        %v1493 = vpop.f32.mrb[0].mxu0
        %v1494 = vpop.f32.mrb[0].mxu0
        %v1495 = vadd.f32 %v1394, %v1494
        %v1496 = vpop.f32.mrb[0].mxu0
        %1497 = vmatprep.mubr.bf16.mxu0 0
        %1498 = vmatmul.mubr.bf16.gmra.mrb[0].mxu0 %v1422
        %v1499 = vpop.f32.mrb[0].mxu0
        %v1500 = vadd.f32 %v1394, %v1499
        %v1501 = vpop.f32.mrb[0].mxu0
        %v1502 = vpop.f32.mrb[0].mxu0
        %v1503 = vadd.f32 %v1394, %v1502
        %v1504 = vpop.f32.mrb[0].mxu0
        %1505 = vmatprep.mubr.bf16.mxu0 0
        %1506 = vmatmul.mubr.bf16.gmra.mrb[0].mxu0 %v1425
        %v1507 = vpop.f32.mrb[0].mxu0
        %v1508 = vadd.f32 %v1394, %v1507
        %v1509 = vpop.f32.mrb[0].mxu0
        %v1510 = vpop.f32.mrb[0].mxu0
        %v1511 = vadd.f32 %v1394, %v1510
        %v1512 = vpop.f32.mrb[0].mxu0
        %1513 = vmatprep.mubr.bf16.mxu0 0
        %1514 = vmatmul.mubr.bf16.gmra.mrb[0].mxu0 %v1428
        %v1515 = vpop.f32.mrb[0].mxu0
        %v1516 = vadd.f32 %v1394, %v1515
        %v1517 = vpop.f32.mrb[0].mxu0
        %v1518 = vpop.f32.mrb[0].mxu0
        %v1519 = vadd.f32 %v1394, %v1518
        %v1520 = vpop.f32.mrb[0].mxu0
        %1521 = vmatprep.mubr.bf16.mxu0 0
        %1522 = vmatmul.mubr.bf16.gmra.mrb[0].mxu0 %v1431
        %v1523 = vpop.f32.mrb[0].mxu0
        %v1524 = vadd.f32 %v1394, %v1523
        %v1525 = vpop.f32.mrb[0].mxu0
        %v1526 = vpop.f32.mrb[0].mxu0
        %v1527 = vadd.f32 %v1394, %v1526
        %v1528 = vpop.f32.mrb[0].mxu0
        %1529 = vdwg.mxu0
        %v1530 = vmax.f32 %v1468, 0.0
        %v1531 = vmax.f32 %v1471, 0.0
        %v1532 = vmax.f32 %v1476, 0.0
        %v1533 = vmax.f32 %v1479, 0.0
        %v1534 = vmax.f32 %v1484, 0.0
        %v1535 = vmax.f32 %v1487, 0.0
        %v1536 = vmax.f32 %v1492, 0.0
        %v1537 = vmax.f32 %v1495, 0.0
        %v1538 = vmax.f32 %v1500, 0.0
        %v1539 = vmax.f32 %v1503, 0.0
        %v1540 = vmax.f32 %v1508, 0.0
        %v1541 = vmax.f32 %v1511, 0.0
        %v1542 = vmax.f32 %v1516, 0.0
        %v1543 = vmax.f32 %v1519, 0.0
        %v1544 = vmax.f32 %v1524, 0.0
        %v1545 = vmax.f32 %v1527, 0.0
        %1546 = vst [vmem:[%s692] sm:$0xff] %v1530
        %1547 = vst [vmem:[%s692 + $0x8] sm:$0xff] %v1531
        %1548 = vst [vmem:[%s692 + $0x10] sm:$0xff] %v1532
        %1549 = vst [vmem:[%s692 + $0x18] sm:$0xff] %v1533
        %1550 = vst [vmem:[%s692 + $0x20] sm:$0xff] %v1534
        %1551 = vst [vmem:[%s692 + $0x28] sm:$0xff] %v1535
        %1552 = vst [vmem:[%s692 + $0x30] sm:$0xff] %v1536
        %1553 = vst [vmem:[%s692 + $0x38] sm:$0xff] %v1537
        %1554 = vst [vmem:[%s692 + $0x40] sm:$0xff] %v1538
        %1555 = vst [vmem:[%s692 + $0x48] sm:$0xff] %v1539
        %1556 = vst [vmem:[%s692 + $0x50] sm:$0xff] %v1540
        %1557 = vst [vmem:[%s692 + $0x58] sm:$0xff] %v1541
        %1558 = vst [vmem:[%s692 + $0x60] sm:$0xff] %v1542
        %1559 = vst [vmem:[%s692 + $0x68] sm:$0xff] %v1543
        %1560 = vst [vmem:[%s692 + $0x70] sm:$0xff] %v1544
        %1561 = vst [vmem:[%s692 + $0x78] sm:$0xff] %v1545
        %v1562 = vpack.c.bf16 %v1531, %v1530
        %v1563 = vpack.c.bf16 %v1533, %v1532
        %v1564 = vpack.c.bf16 %v1535, %v1534
        %v1565 = vpack.c.bf16 %v1537, %v1536
        %v1566 = vpack.c.bf16 %v1539, %v1538
        %v1567 = vpack.c.bf16 %v1541, %v1540
        %v1568 = vpack.c.bf16 %v1543, %v1542
        %v1569 = vpack.c.bf16 %v1545, %v1544
        %v1570 = vld [vmem:[%s9] sm:$0xf]
        %v1571 = vld [vmem:[%s9 + $0x4] sm:$0xf]
        %v1572 = vld [vmem:[%s9 + $0x8] sm:$0xf]
        %v1573 = vld [vmem:[%s9 + $0xc] sm:$0xf]
        %v1574 = vld [vmem:[%s9 + $0x10] sm:$0xf]
        %v1575 = vld [vmem:[%s9 + $0x14] sm:$0xf]
        %v1576 = vld [vmem:[%s9 + $0x18] sm:$0xf]
        %v1577 = vld [vmem:[%s9 + $0x1c] sm:$0xf]
        %v1578 = vld [vmem:[%s9 + $0x20] sm:$0xf]
        %v1579 = vld [vmem:[%s9 + $0x24] sm:$0xf]
        %v1580 = vld [vmem:[%s9 + $0x28] sm:$0xf]
        %v1581 = vld [vmem:[%s9 + $0x2c] sm:$0xf]
        %v1582 = vld [vmem:[%s9 + $0x30] sm:$0xf]
        %v1583 = vld [vmem:[%s9 + $0x34] sm:$0xf]
        %v1584 = vld [vmem:[%s9 + $0x38] sm:$0xf]
        %v1585 = vld [vmem:[%s9 + $0x3c] sm:$0xf]
        %v1586 = vld [vmem:[%s10] sm:$0x1]
        %v1588 = vlaneseq
        %v1589 = vshrl.u32 %v1588, 7
        %v1590 = vsub.s32 0, %v1589
        %v1591 = vrot.slane %v1586, %v1590
        %v1609 = vunpack.c.l.b16 %v1570
        %v1610 = vunpack.c.l.b16 %v1571
        %v1611 = vunpack.c.l.b16 %v1572
        %v1612 = vunpack.c.l.b16 %v1573
        %v1613 = vunpack.c.l.b16 %v1574
        %v1614 = vunpack.c.l.b16 %v1575
        %v1615 = vunpack.c.l.b16 %v1576
        %v1616 = vunpack.c.l.b16 %v1577
        %v1617 = vunpack.c.l.b16 %v1578
        %v1618 = vunpack.c.l.b16 %v1579
        %v1619 = vunpack.c.l.b16 %v1580
        %v1620 = vunpack.c.l.b16 %v1581
        %v1621 = vunpack.c.l.b16 %v1582
        %v1622 = vunpack.c.l.b16 %v1583
        %v1623 = vunpack.c.l.b16 %v1584
        %v1624 = vunpack.c.l.b16 %v1585
        %v1625 = vpack.c.b16 %v1610, %v1609
        %v1626 = vpack.c.b16 %v1612, %v1611
        %v1627 = vpack.c.b16 %v1614, %v1613
        %v1628 = vpack.c.b16 %v1616, %v1615
        %v1629 = vpack.c.b16 %v1618, %v1617
        %v1630 = vpack.c.b16 %v1620, %v1619
        %v1631 = vpack.c.b16 %v1622, %v1621
        %v1632 = vpack.c.b16 %v1624, %v1623
        %1641 = vmatprep.subr.bf16.mxu0 0
        %1642 = vmatpush1.bf16.msra.mxu0 %v1625
        %1643 = vmatprep.subr.bf16.mxu0 0
        %1644 = vmatpush1.bf16.msra.mxu0 %v1626
        %1645 = vmatprep.subr.bf16.mxu0 0
        %1646 = vmatpush1.bf16.msra.mxu0 %v1627
        %1647 = vmatprep.subr.bf16.mxu0 0
        %1648 = vmatpush1.bf16.msra.mxu0 %v1628
        %1649 = vmatprep.subr.bf16.mxu0 0
        %1650 = vmatpush1.bf16.msra.mxu0 %v1629
        %1651 = vmatprep.subr.bf16.mxu0 0
        %1652 = vmatpush1.bf16.msra.mxu0 %v1630
        %1653 = vmatprep.subr.bf16.mxu0 0
        %1654 = vmatpush1.bf16.msra.mxu0 %v1631
        %1655 = vmatprep.subr.bf16.mxu0 0
        %1656 = vmatpush1.bf16.msra.mxu0 %v1632
        %1657 = vmatprep.subr.bf16.mxu0 0
        %1658 = vmatpush1.bf16.msra.mxu0 0
        %1659 = vmatprep.subr.bf16.mxu0 0
        %1660 = vmatpush1.bf16.msra.mxu0 0
        %1661 = vmatprep.subr.bf16.mxu0 0
        %1662 = vmatpush1.bf16.msra.mxu0 0
        %1663 = vmatprep.subr.bf16.mxu0 0
        %1664 = vmatpush1.bf16.msra.mxu0 0
        %1665 = vmatprep.subr.bf16.mxu0 0
        %1666 = vmatpush1.bf16.msra.mxu0 0
        %1667 = vmatprep.subr.bf16.mxu0 0
        %1668 = vmatpush1.bf16.msra.mxu0 0
        %1669 = vmatprep.subr.bf16.mxu0 0
        %1670 = vmatpush1.bf16.msra.mxu0 0
        %1671 = vmatprep.subr.bf16.mxu0 0
        %1672 = vmatpush1.bf16.msra.mxu0 0
        %1673 = vmatprep.mubr.bf16.mxu0 0
        %1674 = vmatmul.mubr.bf16.gmra.mrb[0].mxu0 %v1562
        %v1675 = vpop.f32.mrb[0].mxu0
        %v1676 = vadd.f32 %v1591, %v1675
        %v1677 = vpop.f32.mrb[0].mxu0
        %v1678 = vpop.f32.mrb[0].mxu0
        %v1679 = vadd.f32 %v1591, %v1678
        %v1680 = vpop.f32.mrb[0].mxu0
        %1681 = vmatprep.mubr.bf16.mxu0 0
        %1682 = vmatmul.mubr.bf16.gmra.mrb[0].mxu0 %v1563
        %v1683 = vpop.f32.mrb[0].mxu0
        %v1684 = vadd.f32 %v1591, %v1683
        %v1685 = vpop.f32.mrb[0].mxu0
        %v1686 = vpop.f32.mrb[0].mxu0
        %v1687 = vadd.f32 %v1591, %v1686
        %v1688 = vpop.f32.mrb[0].mxu0
        %1689 = vmatprep.mubr.bf16.mxu0 0
        %1690 = vmatmul.mubr.bf16.gmra.mrb[0].mxu0 %v1564
        %v1691 = vpop.f32.mrb[0].mxu0
        %v1692 = vadd.f32 %v1591, %v1691
        %v1693 = vpop.f32.mrb[0].mxu0
        %v1694 = vpop.f32.mrb[0].mxu0
        %v1695 = vadd.f32 %v1591, %v1694
        %v1696 = vpop.f32.mrb[0].mxu0
        %1697 = vmatprep.mubr.bf16.mxu0 0
        %1698 = vmatmul.mubr.bf16.gmra.mrb[0].mxu0 %v1565
        %v1699 = vpop.f32.mrb[0].mxu0
        %v1700 = vadd.f32 %v1591, %v1699
        %v1701 = vpop.f32.mrb[0].mxu0
        %v1702 = vpop.f32.mrb[0].mxu0
        %v1703 = vadd.f32 %v1591, %v1702
        %v1704 = vpop.f32.mrb[0].mxu0
        %1705 = vmatprep.mubr.bf16.mxu0 0
        %1706 = vmatmul.mubr.bf16.gmra.mrb[0].mxu0 %v1566
        %v1707 = vpop.f32.mrb[0].mxu0
        %v1708 = vadd.f32 %v1591, %v1707
        %v1709 = vpop.f32.mrb[0].mxu0
        %v1710 = vpop.f32.mrb[0].mxu0
        %v1711 = vadd.f32 %v1591, %v1710
        %v1712 = vpop.f32.mrb[0].mxu0
        %1713 = vmatprep.mubr.bf16.mxu0 0
        %1714 = vmatmul.mubr.bf16.gmra.mrb[0].mxu0 %v1567
        %v1715 = vpop.f32.mrb[0].mxu0
        %v1716 = vadd.f32 %v1591, %v1715
        %v1717 = vpop.f32.mrb[0].mxu0
        %v1718 = vpop.f32.mrb[0].mxu0
        %v1719 = vadd.f32 %v1591, %v1718
        %v1720 = vpop.f32.mrb[0].mxu0
        %1721 = vmatprep.mubr.bf16.mxu0 0
        %1722 = vmatmul.mubr.bf16.gmra.mrb[0].mxu0 %v1568
        %v1723 = vpop.f32.mrb[0].mxu0
        %v1724 = vadd.f32 %v1591, %v1723
        %v1725 = vpop.f32.mrb[0].mxu0
        %v1726 = vpop.f32.mrb[0].mxu0
        %v1727 = vadd.f32 %v1591, %v1726
        %v1728 = vpop.f32.mrb[0].mxu0
        %1729 = vmatprep.mubr.bf16.mxu0 0
        %1730 = vmatmul.mubr.bf16.gmra.mrb[0].mxu0 %v1569
        %v1731 = vpop.f32.mrb[0].mxu0
        %v1732 = vadd.f32 %v1591, %v1731
        %v1733 = vpop.f32.mrb[0].mxu0
        %v1734 = vpop.f32.mrb[0].mxu0
        %v1735 = vadd.f32 %v1591, %v1734
        %v1736 = vpop.f32.mrb[0].mxu0
        %1737 = vdwg.mxu0
        %v1738 = vmax.f32 %v1676, 0.0
        %v1739 = vmax.f32 %v1679, 0.0
        %v1740 = vmax.f32 %v1684, 0.0
        %v1741 = vmax.f32 %v1687, 0.0
        %v1742 = vmax.f32 %v1692, 0.0
        %v1743 = vmax.f32 %v1695, 0.0
        %v1744 = vmax.f32 %v1700, 0.0
        %v1745 = vmax.f32 %v1703, 0.0
        %v1746 = vmax.f32 %v1708, 0.0
        %v1747 = vmax.f32 %v1711, 0.0
        %v1748 = vmax.f32 %v1716, 0.0
        %v1749 = vmax.f32 %v1719, 0.0
        %v1750 = vmax.f32 %v1724, 0.0
        %v1751 = vmax.f32 %v1727, 0.0
        %v1752 = vmax.f32 %v1732, 0.0
        %v1753 = vmax.f32 %v1735, 0.0
        %v1754 = vpack.c.bf16 %v1739, %v1738
        %v1755 = vpack.c.bf16 %v1741, %v1740
        %v1756 = vpack.c.bf16 %v1743, %v1742
        %v1757 = vpack.c.bf16 %v1745, %v1744
        %v1758 = vpack.c.bf16 %v1747, %v1746
        %v1759 = vpack.c.bf16 %v1749, %v1748
        %v1760 = vpack.c.bf16 %v1751, %v1750
        %v1761 = vpack.c.bf16 %v1753, %v1752
        %v1762 = vld [vmem:[#allocation13] sm:$0xf]
        %v1763 = vld [vmem:[#allocation13 + $0x4] sm:$0xf]
        %v1764 = vld [vmem:[#allocation13 + $0x8] sm:$0xf]
        %v1765 = vld [vmem:[#allocation13 + $0xc] sm:$0xf]
        %v1766 = vld [vmem:[%s12] sm:$0x1]
        %v1768 = vlaneseq
        %v1769 = vshrl.u32 %v1768, 7
        %v1770 = vsub.s32 0, %v1769
        %v1771 = vrot.slane %v1766, %v1770
        %v1777 = vunpack.c.l.b16 %v1762
        %v1778 = vunpack.c.l.b16 %v1763
        %v1779 = vunpack.c.l.b16 %v1764
        %v1780 = vunpack.c.l.b16 %v1765
        %v1781 = vpack.c.b16 %v1778, %v1777
        %v1782 = vpack.c.b16 %v1780, %v1779
        %v1786 = vsel %vm1408, %v1754, 0
        %v1789 = vsel %vm1408, %v1755, 0
        %v1792 = vsel %vm1408, %v1756, 0
        %v1795 = vsel %vm1408, %v1757, 0
        %v1798 = vsel %vm1408, %v1758, 0
        %v1801 = vsel %vm1408, %v1759, 0
        %v1804 = vsel %vm1408, %v1760, 0
        %v1807 = vsel %vm1408, %v1761, 0
        %1809 = vmatprep.subr.bf16.mxu0 0
        %1810 = vmatpush1.bf16.msra.mxu0 %v1781
        %1811 = vmatprep.subr.bf16.mxu0 0
        %1812 = vmatpush1.bf16.msra.mxu0 %v1782
        %1813 = vmatprep.subr.bf16.mxu0 0
        %1814 = vmatpush1.bf16.msra.mxu0 0
        %1815 = vmatprep.subr.bf16.mxu0 0
        %1816 = vmatpush1.bf16.msra.mxu0 0
        %1817 = vmatprep.subr.bf16.mxu0 0
        %1818 = vmatpush1.bf16.msra.mxu0 0
        %1819 = vmatprep.subr.bf16.mxu0 0
        %1820 = vmatpush1.bf16.msra.mxu0 0
        %1821 = vmatprep.subr.bf16.mxu0 0
        %1822 = vmatpush1.bf16.msra.mxu0 0
        %1823 = vmatprep.subr.bf16.mxu0 0
        %1824 = vmatpush1.bf16.msra.mxu0 0
        %1825 = vmatprep.subr.bf16.mxu0 0
        %1826 = vmatpush1.bf16.msra.mxu0 0
        %1827 = vmatprep.subr.bf16.mxu0 0
        %1828 = vmatpush1.bf16.msra.mxu0 0
        %1829 = vmatprep.subr.bf16.mxu0 0
        %1830 = vmatpush1.bf16.msra.mxu0 0
        %1831 = vmatprep.subr.bf16.mxu0 0
        %1832 = vmatpush1.bf16.msra.mxu0 0
        %1833 = vmatprep.subr.bf16.mxu0 0
        %1834 = vmatpush1.bf16.msra.mxu0 0
        %1835 = vmatprep.subr.bf16.mxu0 0
        %1836 = vmatpush1.bf16.msra.mxu0 0
        %1837 = vmatprep.subr.bf16.mxu0 0
        %1838 = vmatpush1.bf16.msra.mxu0 0
        %1839 = vmatprep.subr.bf16.mxu0 0
        %1840 = vmatpush1.bf16.msra.mxu0 0
        %1841 = vmatprep.mubr.bf16.mxu0 0
        %1842 = vmatmul.mubr.bf16.gmra.mrb[0].mxu0 %v1786
        %v1843 = vpop.f32.mrb[0].mxu0
        %v1844 = vadd.f32 %v1771, %v1843
        %v1845 = vpop.f32.mrb[0].mxu0
        %v1846 = vpop.f32.mrb[0].mxu0
        %v1847 = vadd.f32 %v1771, %v1846
        %v1848 = vpop.f32.mrb[0].mxu0
        %1849 = vmatprep.mubr.bf16.mxu0 0
        %1850 = vmatmul.mubr.bf16.gmra.mrb[0].mxu0 %v1789
        %v1851 = vpop.f32.mrb[0].mxu0
        %v1852 = vadd.f32 %v1771, %v1851
        %v1853 = vpop.f32.mrb[0].mxu0
        %v1854 = vpop.f32.mrb[0].mxu0
        %v1855 = vadd.f32 %v1771, %v1854
        %v1856 = vpop.f32.mrb[0].mxu0
        %1857 = vmatprep.mubr.bf16.mxu0 0
        %1858 = vmatmul.mubr.bf16.gmra.mrb[0].mxu0 %v1792
        %v1859 = vpop.f32.mrb[0].mxu0
        %v1860 = vadd.f32 %v1771, %v1859
        %v1861 = vpop.f32.mrb[0].mxu0
        %v1862 = vpop.f32.mrb[0].mxu0
        %v1863 = vadd.f32 %v1771, %v1862
        %v1864 = vpop.f32.mrb[0].mxu0
        %1865 = vmatprep.mubr.bf16.mxu0 0
        %1866 = vmatmul.mubr.bf16.gmra.mrb[0].mxu0 %v1795
        %v1867 = vpop.f32.mrb[0].mxu0
        %v1868 = vadd.f32 %v1771, %v1867
        %v1869 = vpop.f32.mrb[0].mxu0
        %v1870 = vpop.f32.mrb[0].mxu0
        %v1871 = vadd.f32 %v1771, %v1870
        %v1872 = vpop.f32.mrb[0].mxu0
        %1873 = vmatprep.mubr.bf16.mxu0 0
        %1874 = vmatmul.mubr.bf16.gmra.mrb[0].mxu0 %v1798
        %v1875 = vpop.f32.mrb[0].mxu0
        %v1876 = vadd.f32 %v1771, %v1875
        %v1877 = vpop.f32.mrb[0].mxu0
        %v1878 = vpop.f32.mrb[0].mxu0
        %v1879 = vadd.f32 %v1771, %v1878
        %v1880 = vpop.f32.mrb[0].mxu0
        %1881 = vmatprep.mubr.bf16.mxu0 0
        %1882 = vmatmul.mubr.bf16.gmra.mrb[0].mxu0 %v1801
        %v1883 = vpop.f32.mrb[0].mxu0
        %v1884 = vadd.f32 %v1771, %v1883
        %v1885 = vpop.f32.mrb[0].mxu0
        %v1886 = vpop.f32.mrb[0].mxu0
        %v1887 = vadd.f32 %v1771, %v1886
        %v1888 = vpop.f32.mrb[0].mxu0
        %1889 = vmatprep.mubr.bf16.mxu0 0
        %1890 = vmatmul.mubr.bf16.gmra.mrb[0].mxu0 %v1804
        %v1891 = vpop.f32.mrb[0].mxu0
        %v1892 = vadd.f32 %v1771, %v1891
        %v1893 = vpop.f32.mrb[0].mxu0
        %v1894 = vpop.f32.mrb[0].mxu0
        %v1895 = vadd.f32 %v1771, %v1894
        %v1896 = vpop.f32.mrb[0].mxu0
        %1897 = vmatprep.mubr.bf16.mxu0 0
        %1898 = vmatmul.mubr.bf16.gmra.mrb[0].mxu0 %v1807
        %v1899 = vpop.f32.mrb[0].mxu0
        %v1900 = vadd.f32 %v1771, %v1899
        %v1901 = vpop.f32.mrb[0].mxu0
        %v1902 = vpop.f32.mrb[0].mxu0
        %v1903 = vadd.f32 %v1771, %v1902
        %v1904 = vpop.f32.mrb[0].mxu0
        %1905 = vdwg.mxu0
        %v1906 = vmax.f32 %v1844, 0.0
        %v1907 = vmax.f32 %v1847, 0.0
        %v1908 = vmax.f32 %v1852, 0.0
        %v1909 = vmax.f32 %v1855, 0.0
        %v1910 = vmax.f32 %v1860, 0.0
        %v1911 = vmax.f32 %v1863, 0.0
        %v1912 = vmax.f32 %v1868, 0.0
        %v1913 = vmax.f32 %v1871, 0.0
        %v1914 = vmax.f32 %v1876, 0.0
        %v1915 = vmax.f32 %v1879, 0.0
        %v1916 = vmax.f32 %v1884, 0.0
        %v1917 = vmax.f32 %v1887, 0.0
        %v1918 = vmax.f32 %v1892, 0.0
        %v1919 = vmax.f32 %v1895, 0.0
        %v1920 = vmax.f32 %v1900, 0.0
        %v1921 = vmax.f32 %v1903, 0.0
        %v1922 = vpack.c.bf16 %v1907, %v1906
        %v1923 = vpack.c.bf16 %v1909, %v1908
        %v1924 = vpack.c.bf16 %v1911, %v1910
        %v1925 = vpack.c.bf16 %v1913, %v1912
        %v1926 = vpack.c.bf16 %v1915, %v1914
        %v1927 = vpack.c.bf16 %v1917, %v1916
        %v1928 = vpack.c.bf16 %v1919, %v1918
        %v1929 = vpack.c.bf16 %v1921, %v1920
        %v1930 = vld [vmem:[#allocation14] sm:$0xf]
        %v1931 = vld [vmem:[#allocation14 + $0x4] sm:$0xf]
        %v1932 = vld [vmem:[#allocation14 + $0x8] sm:$0xf]
        %v1933 = vld [vmem:[#allocation14 + $0xc] sm:$0xf]
        %v1934 = vld [vmem:[#allocation14 + $0x10] sm:$0xf]
        %v1935 = vld [vmem:[#allocation14 + $0x14] sm:$0xf]
        %v1936 = vld [vmem:[#allocation14 + $0x18] sm:$0xf]
        %v1937 = vld [vmem:[#allocation14 + $0x1c] sm:$0xf]
        %v1938 = vld [vmem:[%s14] sm:$0x1]
        %v1940 = vlaneseq
        %v1941 = vshrl.u32 %v1940, 7
        %v1942 = vsub.s32 0, %v1941
        %v1943 = vrot.slane %v1938, %v1942
        %v1953 = vunpack.c.l.b16 %v1930
        %v1954 = vunpack.c.l.b16 %v1931
        %v1955 = vunpack.c.l.b16 %v1932
        %v1956 = vunpack.c.l.b16 %v1933
        %v1957 = vunpack.c.l.b16 %v1934
        %v1958 = vunpack.c.l.b16 %v1935
        %v1959 = vunpack.c.l.b16 %v1936
        %v1960 = vunpack.c.l.b16 %v1937
        %v1961 = vpack.c.b16 %v1954, %v1953
        %v1962 = vpack.c.b16 %v1956, %v1955
        %v1963 = vpack.c.b16 %v1958, %v1957
        %v1964 = vpack.c.b16 %v1960, %v1959
        %v1970 = vsel %vm1239, %v1922, 0
        %v1973 = vsel %vm1239, %v1923, 0
        %v1976 = vsel %vm1239, %v1924, 0
        %v1979 = vsel %vm1239, %v1925, 0
        %v1982 = vsel %vm1239, %v1926, 0
        %v1985 = vsel %vm1239, %v1927, 0
        %v1988 = vsel %vm1239, %v1928, 0
        %v1991 = vsel %vm1239, %v1929, 0
        %1993 = vmatprep.subr.bf16.mxu0 0
        %1994 = vmatpush1.bf16.msra.mxu0 %v1961
        %1995 = vmatprep.subr.bf16.mxu0 0
        %1996 = vmatpush1.bf16.msra.mxu0 %v1962
        %1997 = vmatprep.subr.bf16.mxu0 0
        %1998 = vmatpush1.bf16.msra.mxu0 %v1963
        %1999 = vmatprep.subr.bf16.mxu0 0
        %2000 = vmatpush1.bf16.msra.mxu0 %v1964
        %2001 = vmatprep.subr.bf16.mxu0 0
        %2002 = vmatpush1.bf16.msra.mxu0 0
        %2003 = vmatprep.subr.bf16.mxu0 0
        %2004 = vmatpush1.bf16.msra.mxu0 0
        %2005 = vmatprep.subr.bf16.mxu0 0
        %2006 = vmatpush1.bf16.msra.mxu0 0
        %2007 = vmatprep.subr.bf16.mxu0 0
        %2008 = vmatpush1.bf16.msra.mxu0 0
        %2009 = vmatprep.subr.bf16.mxu0 0
        %2010 = vmatpush1.bf16.msra.mxu0 0
        %2011 = vmatprep.subr.bf16.mxu0 0
        %2012 = vmatpush1.bf16.msra.mxu0 0
        %2013 = vmatprep.subr.bf16.mxu0 0
        %2014 = vmatpush1.bf16.msra.mxu0 0
        %2015 = vmatprep.subr.bf16.mxu0 0
        %2016 = vmatpush1.bf16.msra.mxu0 0
        %2017 = vmatprep.subr.bf16.mxu0 0
        %2018 = vmatpush1.bf16.msra.mxu0 0
        %2019 = vmatprep.subr.bf16.mxu0 0
        %2020 = vmatpush1.bf16.msra.mxu0 0
        %2021 = vmatprep.subr.bf16.mxu0 0
        %2022 = vmatpush1.bf16.msra.mxu0 0
        %2023 = vmatprep.subr.bf16.mxu0 0
        %2024 = vmatpush1.bf16.msra.mxu0 0
        %2025 = vmatprep.mubr.bf16.mxu0 0
        %2026 = vmatmul.mubr.bf16.gmra.mrb[0].mxu0 %v1970
        %v2027 = vpop.f32.mrb[0].mxu0
        %v2028 = vadd.f32 %v1943, %v2027
        %v2029 = vpop.f32.mrb[0].mxu0
        %v2030 = vpop.f32.mrb[0].mxu0
        %v2031 = vadd.f32 %v1943, %v2030
        %v2032 = vpop.f32.mrb[0].mxu0
        %2033 = vmatprep.mubr.bf16.mxu0 0
        %2034 = vmatmul.mubr.bf16.gmra.mrb[0].mxu0 %v1973
        %v2035 = vpop.f32.mrb[0].mxu0
        %v2036 = vadd.f32 %v1943, %v2035
        %v2037 = vpop.f32.mrb[0].mxu0
        %v2038 = vpop.f32.mrb[0].mxu0
        %v2039 = vadd.f32 %v1943, %v2038
        %v2040 = vpop.f32.mrb[0].mxu0
        %2041 = vmatprep.mubr.bf16.mxu0 0
        %2042 = vmatmul.mubr.bf16.gmra.mrb[0].mxu0 %v1976
        %v2043 = vpop.f32.mrb[0].mxu0
        %v2044 = vadd.f32 %v1943, %v2043
        %v2045 = vpop.f32.mrb[0].mxu0
        %v2046 = vpop.f32.mrb[0].mxu0
        %v2047 = vadd.f32 %v1943, %v2046
        %v2048 = vpop.f32.mrb[0].mxu0
        %2049 = vmatprep.mubr.bf16.mxu0 0
        %2050 = vmatmul.mubr.bf16.gmra.mrb[0].mxu0 %v1979
        %v2051 = vpop.f32.mrb[0].mxu0
        %v2052 = vadd.f32 %v1943, %v2051
        %v2053 = vpop.f32.mrb[0].mxu0
        %v2054 = vpop.f32.mrb[0].mxu0
        %v2055 = vadd.f32 %v1943, %v2054
        %v2056 = vpop.f32.mrb[0].mxu0
        %2057 = vmatprep.mubr.bf16.mxu0 0
        %2058 = vmatmul.mubr.bf16.gmra.mrb[0].mxu0 %v1982
        %v2059 = vpop.f32.mrb[0].mxu0
        %v2060 = vadd.f32 %v1943, %v2059
        %v2061 = vpop.f32.mrb[0].mxu0
        %v2062 = vpop.f32.mrb[0].mxu0
        %v2063 = vadd.f32 %v1943, %v2062
        %v2064 = vpop.f32.mrb[0].mxu0
        %2065 = vmatprep.mubr.bf16.mxu0 0
        %2066 = vmatmul.mubr.bf16.gmra.mrb[0].mxu0 %v1985
        %v2067 = vpop.f32.mrb[0].mxu0
        %v2068 = vadd.f32 %v1943, %v2067
        %v2069 = vpop.f32.mrb[0].mxu0
        %v2070 = vpop.f32.mrb[0].mxu0
        %v2071 = vadd.f32 %v1943, %v2070
        %v2072 = vpop.f32.mrb[0].mxu0
        %2073 = vmatprep.mubr.bf16.mxu0 0
        %2074 = vmatmul.mubr.bf16.gmra.mrb[0].mxu0 %v1988
        %v2075 = vpop.f32.mrb[0].mxu0
        %v2076 = vadd.f32 %v1943, %v2075
        %v2077 = vpop.f32.mrb[0].mxu0
        %v2078 = vpop.f32.mrb[0].mxu0
        %v2079 = vadd.f32 %v1943, %v2078
        %v2080 = vpop.f32.mrb[0].mxu0
        %2081 = vmatprep.mubr.bf16.mxu0 0
        %2082 = vmatmul.mubr.bf16.gmra.mrb[0].mxu0 %v1991
        %v2083 = vpop.f32.mrb[0].mxu0
        %v2084 = vadd.f32 %v1943, %v2083
        %v2085 = vpop.f32.mrb[0].mxu0
        %v2086 = vpop.f32.mrb[0].mxu0
        %v2087 = vadd.f32 %v1943, %v2086
        %v2088 = vpop.f32.mrb[0].mxu0
        %2089 = vdwg.mxu0
        %v2090 = vmax.f32 %v2028, 0.0
        %v2091 = vmax.f32 %v2031, 0.0
        %v2092 = vmax.f32 %v2036, 0.0
        %v2093 = vmax.f32 %v2039, 0.0
        %v2094 = vmax.f32 %v2044, 0.0
        %v2095 = vmax.f32 %v2047, 0.0
        %v2096 = vmax.f32 %v2052, 0.0
        %v2097 = vmax.f32 %v2055, 0.0
        %v2098 = vmax.f32 %v2060, 0.0
        %v2099 = vmax.f32 %v2063, 0.0
        %v2100 = vmax.f32 %v2068, 0.0
        %v2101 = vmax.f32 %v2071, 0.0
        %v2102 = vmax.f32 %v2076, 0.0
        %v2103 = vmax.f32 %v2079, 0.0
        %v2104 = vmax.f32 %v2084, 0.0
        %v2105 = vmax.f32 %v2087, 0.0
        %v2106 = vpack.c.bf16 %v2091, %v2090
        %v2107 = vpack.c.bf16 %v2093, %v2092
        %v2108 = vpack.c.bf16 %v2095, %v2094
        %v2109 = vpack.c.bf16 %v2097, %v2096
        %v2110 = vpack.c.bf16 %v2099, %v2098
        %v2111 = vpack.c.bf16 %v2101, %v2100
        %v2112 = vpack.c.bf16 %v2103, %v2102
        %v2113 = vpack.c.bf16 %v2105, %v2104
        %v2114 = vld [vmem:[%s15] sm:$0xff]
        %v2115 = vld [vmem:[%s15 + $0x8] sm:$0xff]
        %v2116 = vld [vmem:[%s15 + $0x10] sm:$0xff]
        %v2117 = vld [vmem:[%s15 + $0x18] sm:$0xff]
        %v2118 = vld [vmem:[%s15 + $0x20] sm:$0xff]
        %v2119 = vld [vmem:[%s15 + $0x28] sm:$0xff]
        %v2120 = vld [vmem:[%s15 + $0x30] sm:$0xff]
        %v2121 = vld [vmem:[%s15 + $0x38] sm:$0xff]
        %v2122 = vld [vmem:[%s15 + $0x40] sm:$0xff]
        %v2123 = vld [vmem:[%s15 + $0x48] sm:$0xff]
        %v2124 = vld [vmem:[%s15 + $0x50] sm:$0xff]
        %v2125 = vld [vmem:[%s15 + $0x58] sm:$0xff]
        %v2126 = vld [vmem:[%s15 + $0x60] sm:$0xff]
        %v2127 = vld [vmem:[%s15 + $0x68] sm:$0xff]
        %v2128 = vld [vmem:[%s15 + $0x70] sm:$0xff]
        %v2129 = vld [vmem:[%s15 + $0x78] sm:$0xff]
        %v2130 = vld [vmem:[%s16] sm:$0x3]
        %v2132 = vlaneseq
        %v2133 = vshrl.u32 %v2132, 7
        %v2134 = vsub.s32 0, %v2133
        %v2135 = vrot.slane %v2130, %v2134
        %v2136 = vlaneseq
        %v2137 = vshrl.u32 %v2136, 7
        %v2138 = vsub.s32 1, %v2137
        %v2139 = vrot.slane %v2130, %v2138
        %v2158 = vunpack.c.l.b16 %v2114
        %v2159 = vunpack.c.h.b16 %v2114
        %v2160 = vunpack.c.l.b16 %v2115
        %v2161 = vunpack.c.h.b16 %v2115
        %v2162 = vunpack.c.l.b16 %v2116
        %v2163 = vunpack.c.h.b16 %v2116
        %v2164 = vunpack.c.l.b16 %v2117
        %v2165 = vunpack.c.h.b16 %v2117
        %v2166 = vunpack.c.l.b16 %v2118
        %v2167 = vunpack.c.h.b16 %v2118
        %v2168 = vunpack.c.l.b16 %v2119
        %v2169 = vunpack.c.h.b16 %v2119
        %v2170 = vunpack.c.l.b16 %v2120
        %v2171 = vunpack.c.h.b16 %v2120
        %v2172 = vunpack.c.l.b16 %v2121
        %v2173 = vunpack.c.h.b16 %v2121
        %v2174 = vunpack.c.l.b16 %v2122
        %v2175 = vunpack.c.h.b16 %v2122
        %v2176 = vunpack.c.l.b16 %v2123
        %v2177 = vunpack.c.h.b16 %v2123
        %v2178 = vunpack.c.l.b16 %v2124
        %v2179 = vunpack.c.h.b16 %v2124
        %v2180 = vunpack.c.l.b16 %v2125
        %v2181 = vunpack.c.h.b16 %v2125
        %v2182 = vunpack.c.l.b16 %v2126
        %v2183 = vunpack.c.h.b16 %v2126
        %v2184 = vunpack.c.l.b16 %v2127
        %v2185 = vunpack.c.h.b16 %v2127
        %v2186 = vunpack.c.l.b16 %v2128
        %v2187 = vunpack.c.h.b16 %v2128
        %v2188 = vunpack.c.l.b16 %v2129
        %v2189 = vunpack.c.h.b16 %v2129
        %v2190 = vpack.c.b16 %v2160, %v2158
        %v2191 = vpack.c.b16 %v2161, %v2159
        %v2192 = vpack.c.b16 %v2164, %v2162
        %v2193 = vpack.c.b16 %v2165, %v2163
        %v2194 = vpack.c.b16 %v2168, %v2166
        %v2195 = vpack.c.b16 %v2169, %v2167
        %v2196 = vpack.c.b16 %v2172, %v2170
        %v2197 = vpack.c.b16 %v2173, %v2171
        %v2198 = vpack.c.b16 %v2176, %v2174
        %v2199 = vpack.c.b16 %v2177, %v2175
        %v2200 = vpack.c.b16 %v2180, %v2178
        %v2201 = vpack.c.b16 %v2181, %v2179
        %v2202 = vpack.c.b16 %v2184, %v2182
        %v2203 = vpack.c.b16 %v2185, %v2183
        %v2204 = vpack.c.b16 %v2188, %v2186
        %v2205 = vpack.c.b16 %v2189, %v2187
        %2222 = vmatprep.subr.bf16.mxu0 %v2191
        %2223 = vmatpush1.bf16.msra.mxu0 %v2190
        %2224 = vmatprep.subr.bf16.mxu0 %v2193
        %2225 = vmatpush1.bf16.msra.mxu0 %v2192
        %2226 = vmatprep.subr.bf16.mxu0 %v2195
        %2227 = vmatpush1.bf16.msra.mxu0 %v2194
        %2228 = vmatprep.subr.bf16.mxu0 %v2197
        %2229 = vmatpush1.bf16.msra.mxu0 %v2196
        %2230 = vmatprep.subr.bf16.mxu0 %v2199
        %2231 = vmatpush1.bf16.msra.mxu0 %v2198
        %2232 = vmatprep.subr.bf16.mxu0 %v2201
        %2233 = vmatpush1.bf16.msra.mxu0 %v2200
        %2234 = vmatprep.subr.bf16.mxu0 %v2203
        %2235 = vmatpush1.bf16.msra.mxu0 %v2202
        %2236 = vmatprep.subr.bf16.mxu0 %v2205
        %2237 = vmatpush1.bf16.msra.mxu0 %v2204
        %2238 = vmatprep.subr.bf16.mxu0 0
        %2239 = vmatpush1.bf16.msra.mxu0 0
        %2240 = vmatprep.subr.bf16.mxu0 0
        %2241 = vmatpush1.bf16.msra.mxu0 0
        %2242 = vmatprep.subr.bf16.mxu0 0
        %2243 = vmatpush1.bf16.msra.mxu0 0
        %2244 = vmatprep.subr.bf16.mxu0 0
        %2245 = vmatpush1.bf16.msra.mxu0 0
        %2246 = vmatprep.subr.bf16.mxu0 0
        %2247 = vmatpush1.bf16.msra.mxu0 0
        %2248 = vmatprep.subr.bf16.mxu0 0
        %2249 = vmatpush1.bf16.msra.mxu0 0
        %2250 = vmatprep.subr.bf16.mxu0 0
        %2251 = vmatpush1.bf16.msra.mxu0 0
        %2252 = vmatprep.subr.bf16.mxu0 0
        %2253 = vmatpush1.bf16.msra.mxu0 0
        %2254 = vmatprep.mubr.bf16.mxu0 0
        %2255 = vmatmul.mubr.bf16.gmra.mrb[0].mxu0 %v2106
        %v2256 = vpop.f32.mrb[0].mxu0
        %v2257 = vadd.f32 %v2135, %v2256
        %v2258 = vpop.f32.mrb[0].mxu0
        %v2259 = vadd.f32 %v2139, %v2258
        %v2260 = vpop.f32.mrb[0].mxu0
        %v2261 = vadd.f32 %v2135, %v2260
        %v2262 = vpop.f32.mrb[0].mxu0
        %v2263 = vadd.f32 %v2139, %v2262
        %2264 = vmatprep.mubr.bf16.mxu0 0
        %2265 = vmatmul.mubr.bf16.gmra.mrb[0].mxu0 %v2107
        %v2266 = vpop.f32.mrb[0].mxu0
        %v2267 = vadd.f32 %v2135, %v2266
        %v2268 = vpop.f32.mrb[0].mxu0
        %v2269 = vadd.f32 %v2139, %v2268
        %v2270 = vpop.f32.mrb[0].mxu0
        %v2271 = vadd.f32 %v2135, %v2270
        %v2272 = vpop.f32.mrb[0].mxu0
        %v2273 = vadd.f32 %v2139, %v2272
        %2274 = vmatprep.mubr.bf16.mxu0 0
        %2275 = vmatmul.mubr.bf16.gmra.mrb[0].mxu0 %v2108
        %v2276 = vpop.f32.mrb[0].mxu0
        %v2277 = vadd.f32 %v2135, %v2276
        %v2278 = vpop.f32.mrb[0].mxu0
        %v2279 = vadd.f32 %v2139, %v2278
        %v2280 = vpop.f32.mrb[0].mxu0
        %v2281 = vadd.f32 %v2135, %v2280
        %v2282 = vpop.f32.mrb[0].mxu0
        %v2283 = vadd.f32 %v2139, %v2282
        %2284 = vmatprep.mubr.bf16.mxu0 0
        %2285 = vmatmul.mubr.bf16.gmra.mrb[0].mxu0 %v2109
        %v2286 = vpop.f32.mrb[0].mxu0
        %v2287 = vadd.f32 %v2135, %v2286
        %v2288 = vpop.f32.mrb[0].mxu0
        %v2289 = vadd.f32 %v2139, %v2288
        %v2290 = vpop.f32.mrb[0].mxu0
        %v2291 = vadd.f32 %v2135, %v2290
        %v2292 = vpop.f32.mrb[0].mxu0
        %v2293 = vadd.f32 %v2139, %v2292
        %2294 = vmatprep.mubr.bf16.mxu0 0
        %2295 = vmatmul.mubr.bf16.gmra.mrb[0].mxu0 %v2110
        %v2296 = vpop.f32.mrb[0].mxu0
        %v2297 = vadd.f32 %v2135, %v2296
        %v2298 = vpop.f32.mrb[0].mxu0
        %v2299 = vadd.f32 %v2139, %v2298
        %v2300 = vpop.f32.mrb[0].mxu0
        %v2301 = vadd.f32 %v2135, %v2300
        %v2302 = vpop.f32.mrb[0].mxu0
        %v2303 = vadd.f32 %v2139, %v2302
        %2304 = vmatprep.mubr.bf16.mxu0 0
        %2305 = vmatmul.mubr.bf16.gmra.mrb[0].mxu0 %v2111
        %v2306 = vpop.f32.mrb[0].mxu0
        %v2307 = vadd.f32 %v2135, %v2306
        %v2308 = vpop.f32.mrb[0].mxu0
        %v2309 = vadd.f32 %v2139, %v2308
        %v2310 = vpop.f32.mrb[0].mxu0
        %v2311 = vadd.f32 %v2135, %v2310
        %v2312 = vpop.f32.mrb[0].mxu0
        %v2313 = vadd.f32 %v2139, %v2312
        %2314 = vmatprep.mubr.bf16.mxu0 0
        %2315 = vmatmul.mubr.bf16.gmra.mrb[0].mxu0 %v2112
        %v2316 = vpop.f32.mrb[0].mxu0
        %v2317 = vadd.f32 %v2135, %v2316
        %v2318 = vpop.f32.mrb[0].mxu0
        %v2319 = vadd.f32 %v2139, %v2318
        %v2320 = vpop.f32.mrb[0].mxu0
        %v2321 = vadd.f32 %v2135, %v2320
        %v2322 = vpop.f32.mrb[0].mxu0
        %v2323 = vadd.f32 %v2139, %v2322
        %2324 = vmatprep.mubr.bf16.mxu0 0
        %2325 = vmatmul.mubr.bf16.gmra.mrb[0].mxu0 %v2113
        %v2326 = vpop.f32.mrb[0].mxu0
        %v2327 = vadd.f32 %v2135, %v2326
        %v2328 = vpop.f32.mrb[0].mxu0
        %v2329 = vadd.f32 %v2139, %v2328
        %v2330 = vpop.f32.mrb[0].mxu0
        %v2331 = vadd.f32 %v2135, %v2330
        %v2332 = vpop.f32.mrb[0].mxu0
        %v2333 = vadd.f32 %v2139, %v2332
        %2334 = vdwg.mxu0
        %2335 = vst [vmem:[%s699] sm:$0xff] %v2257
        %2336 = vst [vmem:[%s699 + $0x8] sm:$0xff] %v2259
        %2337 = vst [vmem:[%s699 + $0x10] sm:$0xff] %v2261
        %2338 = vst [vmem:[%s699 + $0x18] sm:$0xff] %v2263
        %2339 = vst [vmem:[%s699 + $0x20] sm:$0xff] %v2267
        %2340 = vst [vmem:[%s699 + $0x28] sm:$0xff] %v2269
        %2341 = vst [vmem:[%s699 + $0x30] sm:$0xff] %v2271
        %2342 = vst [vmem:[%s699 + $0x38] sm:$0xff] %v2273
        %2343 = vst [vmem:[%s699 + $0x40] sm:$0xff] %v2277
        %2344 = vst [vmem:[%s699 + $0x48] sm:$0xff] %v2279
        %2345 = vst [vmem:[%s699 + $0x50] sm:$0xff] %v2281
        %2346 = vst [vmem:[%s699 + $0x58] sm:$0xff] %v2283
        %2347 = vst [vmem:[%s699 + $0x60] sm:$0xff] %v2287
        %2348 = vst [vmem:[%s699 + $0x68] sm:$0xff] %v2289
        %2349 = vst [vmem:[%s699 + $0x70] sm:$0xff] %v2291
        %2350 = vst [vmem:[%s699 + $0x78] sm:$0xff] %v2293
        %2351 = vst [vmem:[%s699 + $0x80] sm:$0xff] %v2297
        %2352 = vst [vmem:[%s699 + $0x88] sm:$0xff] %v2299
        %2353 = vst [vmem:[%s699 + $0x90] sm:$0xff] %v2301
        %2354 = vst [vmem:[%s699 + $0x98] sm:$0xff] %v2303
        %2355 = vst [vmem:[%s699 + $0xa0] sm:$0xff] %v2307
        %2356 = vst [vmem:[%s699 + $0xa8] sm:$0xff] %v2309
        %2357 = vst [vmem:[%s699 + $0xb0] sm:$0xff] %v2311
        %2358 = vst [vmem:[%s699 + $0xb8] sm:$0xff] %v2313
        %2359 = vst [vmem:[%s699 + $0xc0] sm:$0xff] %v2317
        %2360 = vst [vmem:[%s699 + $0xc8] sm:$0xff] %v2319
        %2361 = vst [vmem:[%s699 + $0xd0] sm:$0xff] %v2321
        %2362 = vst [vmem:[%s699 + $0xd8] sm:$0xff] %v2323
        %2363 = vst [vmem:[%s699 + $0xe0] sm:$0xff] %v2327
        %2364 = vst [vmem:[%s699 + $0xe8] sm:$0xff] %v2329
        %2365 = vst [vmem:[%s699 + $0xf0] sm:$0xff] %v2331
        %2366 = vst [vmem:[%s699 + $0xf8] sm:$0xff] %v2333
        %s2367 = sand.u32 %s413, 1
        %s2368 = scalar_lea.sflag [#allocation4], %s2367
        %s2369 = sand.u32 %s413, 1
        %s2370 = smul.addr %s2369, 128
        %s2371 = scalar_lea.vmem [#allocation16], %s2370
        %s2372 = sand.u32 %s439, 1
        %s2373 = scalar_lea.sflag [#allocation18], %s2372
        %s2374 = sand.u32 %s439, 1
        %s2375 = smul.addr %s2374, 256
        %s2376 = scalar_lea.vmem [#allocation17], %s2375
        // Predicated region
        $region121: #{tpu_custom_call.1} parent=87 // pred_check
          %p2377 = pneg %p423
        $region122: #{tpu_custom_call.1} parent=87 // pred_check_branch
          %2379 = sbr.rel (%p2377) target = $region124
        $region123: #{tpu_custom_call.1} parent=87 // pred_region
          %s2380 = smul.u32 16, %s43
          %s2382 = ssub.s32 2048, 2048
          %2383 = vsyncadd %s2368, %s2382
          %s2384 = smul.addr %s2380, 128
          %s2385 = scalar_lea.hbm %s17, %s2384
          %s2386 = sshll.u32 %s2371, 4
          %s2387 = int_to_ptr.vmem [resolvable:$true] %s2386
          %2392 = dma.vmem_to_hbm [thread:$0]  %s2387, 2048, %s2385, %s2368, 128, 128, 8
        $region124: #{tpu_custom_call.1} parent=87 // pred_fallthru
          _
        // Predicated region
        $region125: #{tpu_custom_call.1} parent=87 // pred_check
          %p2393 = pneg %p449
        $region126: #{tpu_custom_call.1} parent=87 // pred_check_branch
          %2395 = sbr.rel (%p2393) target = $region128
        $region127: #{tpu_custom_call.1} parent=87 // pred_region
          %s2396 = smul.u32 16, %s43
          %s2398 = ssub.s32 4096, 4096
          %2399 = vsyncadd %s2373, %s2398
          %s2400 = smul.addr %s2396, 2
          %s2401 = smul.addr %s2400, 128
          %s2402 = scalar_lea.hbm %s18, %s2401
          %s2403 = sshll.u32 %s2376, 4
          %s2404 = int_to_ptr.vmem [resolvable:$true] %s2403
          %2409 = dma.vmem_to_hbm [thread:$0]  %s2404, 4096, %s2402, %s2373, 256, 256, 16
        $region128: #{tpu_custom_call.1} parent=87 // pred_fallthru
          _
      $region88: #{tpu_custom_call.1} parent=5 // pred_fallthru
        _
      %p2410 = scmp.le.s32.totalorder 2, %s38
      // Predicated region
      $region129: #{tpu_custom_call.1} parent=5 // pred_check
        %p2411 = pneg %p2410
      $region130: #{tpu_custom_call.1} parent=5 // pred_check_branch
        %2413 = sbr.rel (%p2411) target = $region132
      $region131: #{tpu_custom_call.1} parent=5 // pred_region
        %s2414 = ssub.s32 %s38, 2
        // Predicated region
        $region133: #{tpu_custom_call.1} parent=131 // pred_check
          %p2415 = pneg %p429
        $region134: #{tpu_custom_call.1} parent=131 // pred_check_branch
          %2417 = sbr.rel (%p2415) target = $region136
        $region135: #{tpu_custom_call.1} parent=131 // pred_region
          %s2418 = sand.u32 %s414, 1
          %s2419 = scalar_lea.sflag [#allocation4], %s2418
          %s2420 = sand.u32 %s414, 1
          %s2421 = smul.addr %s2420, 128
          %s2422 = scalar_lea.vmem [#allocation16], %s2421
          %2423 = dma.done %s2419, 2048
        $region136: #{tpu_custom_call.1} parent=131 // pred_fallthru
          _
        // Predicated region
        $region137: #{tpu_custom_call.1} parent=131 // pred_check
          %p2424 = pneg %p455
        $region138: #{tpu_custom_call.1} parent=131 // pred_check_branch
          %2426 = sbr.rel (%p2424) target = $region140
        $region139: #{tpu_custom_call.1} parent=131 // pred_region
          %s2427 = sand.u32 %s440, 1
          %s2428 = scalar_lea.sflag [#allocation18], %s2427
          %s2429 = sand.u32 %s440, 1
          %s2430 = smul.addr %s2429, 256
          %s2431 = scalar_lea.vmem [#allocation17], %s2430
          %2432 = dma.done %s2428, 4096
        $region140: #{tpu_custom_call.1} parent=131 // pred_fallthru
          _
      $region132: #{tpu_custom_call.1} parent=5 // pred_fallthru
        _
    $region6: #{tpu_custom_call.1} parent=1 // loop_footer
      %s42 = sadd.s32 1, %s38
    $region7: #{tpu_custom_call.1} parent=1 // loop_footer_branch
      %37 = sbr.rel target = $region3
    $region8: #{tpu_custom_call.1} parent=1 // loop_exit
      _
    %2433 = vsyncpa [#allocation3], 1
    %s2434 = scalar_lea.sflag [#allocation3], 1
    %2435 = vsyncpa %s2434, 1
    %2436 = vsyncpa [#allocation6], 1
    %2437 = vsyncpa [#allocation9], 1
    %2438 = vsyncpa [#allocation12], 1
    %2439 = vsyncpa [#allocation15], 1
    %2440 = vsyncpa [#allocation4], 1
    %s2441 = scalar_lea.sflag [#allocation4], 1
    %2442 = vsyncpa %s2441, 1
    %2443 = vsyncpa [#allocation18], 1
    %s2444 = scalar_lea.sflag [#allocation18], 1
    %2445 = vsyncpa %s2444, 1

</llo_original>
